<compile_context>
chip_gen: v7x
topology: tpu7x:2x2x1
jax: 0.10.0
libtpu: 0.0.40
codegen_flags: <defaults>
</compile_context>

<pallas_src>
import jax
import jax.numpy as jnp
from jax.experimental import pallas as pl
from jax.experimental.pallas import tpu as pltpu


def _tanhshrink(x):
    return x - jnp.tanh(x)


# ---------------------------------------------------------------------------
# Host-side parameter fusion + packing into a single [R, 2*hid] f32 buffer.
# Row ranges / true column widths are static Python ints baked into the kernel.
# ---------------------------------------------------------------------------
def pack_params(params, n_nodes):
    hid = params["w_emb"].shape[1]
    cw = 2 * hid  # packed buffer column width

    # EdgeMLP layer-1 + EdgeAttention layer-1 share src/tgt inputs -> fuse
    # output columns:  pre = src@w_src + tgt@w_tgt + radial*w_rad + b_ea1
    w_src = jnp.concatenate([params["w_e1"][0:hid], params["w_a1"][0:hid]], axis=1)
    w_tgt = jnp.concatenate([params["w_e1"][hid:2 * hid],
                             params["w_a1"][hid:2 * hid]], axis=1)
    w_rad = jnp.concatenate([params["w_e1"][2 * hid:2 * hid + 1],
                             jnp.zeros((1, hid), jnp.float32)], axis=1)
    b_ea1 = jnp.concatenate([params["b_e1"], params["b_a1"]], axis=1)

    # EdgeMLP layer-2 + EdgeAttention layer-2 as one block-diagonal matmul.
    w_ea2 = jnp.zeros((2 * hid, hid + 1), jnp.float32)
    w_ea2 = w_ea2.at[0:hid, 0:hid].set(params["w_e2"])
    w_ea2 = w_ea2.at[hid:2 * hid, hid:hid + 1].set(params["w_a2"])
    b_ea2 = jnp.concatenate([params["b_e2"], params["b_a2"]], axis=1)

    # global_add_pool moved before w_d2:  sum_n(d1@W + b) = (sum_n d1)@W + N*b
    b_d2n = float(n_nodes) * params["b_d2"]

    # NOTE: CoordMLP params (w_c1/b_c1/w_c2/b_c2) exist in the torch module but
    # are dead w.r.t. the returned output, so they are not packed nor used.
    entries = [
        ("w_emb", params["w_emb"]),
        ("w_src", w_src), ("w_tgt", w_tgt), ("w_ea2", w_ea2),
        ("w_n1", params["w_n1"]), ("w_n2", params["w_n2"]),
        ("w_d1", params["w_d1"]), ("w_d2", params["w_d2"]),
        ("w_g1", params["w_g1"]), ("w_g2", params["w_g2"]),
        ("b_emb", params["b_emb"]), ("w_rad", w_rad),
        ("b_ea1", b_ea1), ("b_ea2", b_ea2),
        ("b_n1", params["b_n1"]), ("b_n2", params["b_n2"]),
        ("b_d1", params["b_d1"]), ("b_d2n", b_d2n),
        ("b_g1", params["b_g1"]), ("b_g2", params["b_g2"]),
    ]

    offs = {}
    rows = []
    r = 0
    for name, mat in entries:
        mat = jnp.asarray(mat, jnp.float32)
        nr, nc = mat.shape
        offs[name] = (r, r + nr, nc)
        rows.append(jnp.pad(mat, ((0, 0), (0, cw - nc))))
        r += nr
    buf = jnp.concatenate(rows, axis=0)
    pad = (-buf.shape[0]) % 8
    if pad:
        buf = jnp.pad(buf, ((0, pad), (0, 0)))
    return buf, offs


# ---------------------------------------------------------------------------
# Kernel (one grid step == one graph)
# ---------------------------------------------------------------------------
def make_egnn_kernel(n_edges, hid, offs):
    f32 = jnp.float32

    def egnn_kernel(x_ref, coord_ref, st_ref, srT_ref, p_ref, out_ref):
        def P(name):
            r0, r1, c = offs[name]
            return p_ref[r0:r1, 0:c]          # static slice of the packed buffer

        x = x_ref[0]          # [N, in_nf]
        coord = coord_ref[0]  # [N, 3]
        st = st_ref[0]        # [2E, N]  rows 0:E = one_hot(row), E:2E = one_hot(col)
        srT = srT_ref[0]      # [N, E]   one_hot(row).T  (scatter-add)

        # ---- Embedding: Linear + Tanhshrink ----
        h = _tanhshrink(jnp.dot(x, P("w_emb"), preferred_element_type=f32)
                        + P("b_emb"))                                   # [N, hid]

        # ---- fused endpoint gather: one matmul for features, one for coords ----
        gh = jnp.dot(st, h, preferred_element_type=f32)                 # [2E, hid]
        gc = jnp.dot(st, coord, preferred_element_type=f32)             # [2E, 3]
        src = gh[0:n_edges]
        tgt = gh[n_edges:2 * n_edges]
        rij = gc[0:n_edges] - gc[n_edges:2 * n_edges]                   # [E, 3]
        radial = jnp.sum(rij * rij, axis=1, keepdims=True)              # [E, 1]

        # ---- EdgeMLP layer-1 + EdgeAttention layer-1 (column-fused) ----
        pre = (jnp.dot(src, P("w_src"), preferred_element_type=f32)
               + jnp.dot(tgt, P("w_tgt"), preferred_element_type=f32)
               + radial * P("w_rad") + P("b_ea1"))                      # [E, 2*hid]
        pre = _tanhshrink(pre)

        # ---- EdgeMLP layer-2 + EdgeAttention layer-2 (block-diagonal) ----
        z = jnp.dot(pre, P("w_ea2"), preferred_element_type=f32) + P("b_ea2")
        m = _tanhshrink(z[:, 0:hid])                                    # [E, hid]
        a = jax.nn.sigmoid(z[:, hid:hid + 1])                           # [E, 1]
        edge_feat = m * a                                               # [E, hid]

        # (coordinate update removed: dead code w.r.t. the module output)

        # ---- Node update: scatter-add + residual MLP (lane-concat input) ----
        agg = jnp.dot(srT, edge_feat, preferred_element_type=f32)       # [N, hid]
        nin = jnp.concatenate([h, agg], axis=1)                         # [N, 2*hid]
        n = _tanhshrink(jnp.dot(nin, P("w_n1"), preferred_element_type=f32)
                        + P("b_n1"))
        n = jnp.dot(n, P("w_n2"), preferred_element_type=f32) + P("b_n2")
        h = h + n                                                       # [N, hid]

        # ---- NodeDecoding layer-1, pool, then layer-2 on the pooled vector ----
        d1 = _tanhshrink(jnp.dot(h, P("w_d1"), preferred_element_type=f32)
                         + P("b_d1"))                                   # [N, hid]
        g = jnp.sum(d1, axis=0, keepdims=True)                          # [1, hid]
        g = jnp.dot(g, P("w_d2"), preferred_element_type=f32) + P("b_d2n")

        # ---- GraphDecoding ----
        o = _tanhshrink(jnp.dot(g, P("w_g1"), preferred_element_type=f32)
                        + P("b_g1"))
        o = jnp.dot(o, P("w_g2"), preferred_element_type=f32) + P("b_g2")  # [1, out_nf]

        out_ref[0] = o

    return egnn_kernel


# ---------------------------------------------------------------------------
# Wrappers
# ---------------------------------------------------------------------------
def egnn_forward_batched(params, x, coord, row, col):
    """x: [B, N, in_nf], coord: [B, N, 3], row/col: [B, E] int32 -> [B, out_nf]."""
    B, N, in_nf = x.shape
    E = row.shape[1]
    hid = params["w_emb"].shape[1]
    out_nf = params["w_g2"].shape[1]

    P, offs = pack_params(params, N)

    # glue: one-hot gather/scatter matrices (plain JAX)
    sr = jax.nn.one_hot(row, N, dtype=jnp.float32)        # [B, E, N]
    sc = jax.nn.one_hot(col, N, dtype=jnp.float32)        # [B, E, N]
    st = jnp.concatenate([sr, sc], axis=1)                # [B, 2E, N]
    srT = jnp.swapaxes(sr, 1, 2)                          # [B, N, E]

    kernel = make_egnn_kernel(E, hid, offs)

    out = pl.pallas_call(
        kernel,
        out_shape=jax.ShapeDtypeStruct((B, 1, out_nf), jnp.float32),
        grid=(B,),
        in_specs=[
            pl.BlockSpec((1, N, in_nf), lambda b: (b, 0, 0)),
            pl.BlockSpec((1, N, 3), lambda b: (b, 0, 0)),
            pl.BlockSpec((1, 2 * E, N), lambda b: (b, 0, 0)),
            pl.BlockSpec((1, N, E), lambda b: (b, 0, 0)),
            pl.BlockSpec(P.shape, lambda b: (0, 0)),      # weights: resident
        ],
        out_specs=pl.BlockSpec((1, 1, out_nf), lambda b: (b, 0, 0)),
        compiler_params=pltpu.CompilerParams(
            dimension_semantics=("parallel",)),
    )(x, coord, st, srT, P)
    return out[:, 0, :]                                   # [B, out_nf]


def egnn_forward(params, x, coord, row, col):
    """Single-graph forward matching the torch module signature."""
    out = egnn_forward_batched(params, x[None], coord[None], row[None], col[None])
    return out[0]


# ---------------------------------------------------------------------------
# pure-JAX reference (mirrors the PyTorch forward) for correctness check
# ---------------------------------------------------------------------------
def egnn_reference(params, x, coord, row, col):
    p = params
    ts = _tanhshrink
    lin = lambda v, w, b: v @ w + b
    h = ts(lin(x, p["w_emb"], p["b_emb"]))
    src, tgt = h[row], h[col]
    rij = coord[row] - coord[col]
    radial = jnp.sum(rij * rij, axis=1, keepdims=True)
    agg_in = jnp.concatenate([src, tgt, radial], axis=1)
    m = ts(lin(agg_in, p["w_e1"], p["b_e1"]))
    m = ts(lin(m, p["w_e2"], p["b_e2"]))
    att_in = jnp.concatenate([src, tgt], axis=1)
    a = ts(lin(att_in, p["w_a1"], p["b_a1"]))
    a = jax.nn.sigmoid(lin(a, p["w_a2"], p["b_a2"]))
    edge_feat = m * a
    agg = jax.ops.segment_sum(edge_feat, row, num_segments=x.shape[0])
    nin = jnp.concatenate([h, agg], axis=1)
    n = ts(lin(nin, p["w_n1"], p["b_n1"]))
    n = lin(n, p["w_n2"], p["b_n2"])
    h = h + n
    d = ts(lin(h, p["w_d1"], p["b_d1"]))
    d = lin(d, p["w_d2"], p["b_d2"])
    g = jnp.sum(d, axis=0, keepdims=True)
    o = ts(lin(g, p["w_g1"], p["b_g1"]))
    o = lin(o, p["w_g2"], p["b_g2"])
    return o[0]


def init_linear(key, fan_in, fan_out):
    kw, kb = jax.random.split(key)
    bound = 1.0 / float(fan_in) ** 0.5
    w = jax.random.uniform(kw, (fan_in, fan_out), jnp.float32, -bound, bound)
    b = jax.random.uniform(kb, (1, fan_out), jnp.float32, -bound, bound)
    return w, b


def init_params(key, in_nf, hid, out_nf):
    # edge_nf = node_nf = 0 (edge_attr / node_attr are None), radial_nf = 1
    ks = jax.random.split(key, 13)
    p = {}
    p["w_emb"], p["b_emb"] = init_linear(ks[0], in_nf, hid)
    p["w_e1"], p["b_e1"] = init_linear(ks[1], 2 * hid + 1, hid)
    p["w_e2"], p["b_e2"] = init_linear(ks[2], hid, hid)
    p["w_a1"], p["b_a1"] = init_linear(ks[3], 2 * hid, hid)
    p["w_a2"], p["b_a2"] = init_linear(ks[4], hid, 1)
    # CoordMLP params exist in the torch module but never affect the output.
    p["w_c1"], p["b_c1"] = init_linear(ks[5], hid, hid)
    p["w_c2"], p["b_c2"] = init_linear(ks[6], hid, 1)
    p["w_n1"], p["b_n1"] = init_linear(ks[7], 2 * hid, hid)
    p["w_n2"], p["b_n2"] = init_linear(ks[8], hid, hid)
    p["w_d1"], p["b_d1"] = init_linear(ks[9], hid, hid)
    p["w_d2"], p["b_d2"] = init_linear(ks[10], hid, hid)
    p["w_g1"], p["b_g1"] = init_linear(ks[11], hid, hid)
    p["w_g2"], p["b_g2"] = init_linear(ks[12], hid, out_nf)
    return p


if __name__ == "__main__":
    B, N_NODES, IN_NF, HID, N_EDGES, OUT_NF = 4, 8, 16, 32, 16, 1

    key = jax.random.PRNGKey(0)
    k_par, k_x, k_c, k_r, k_col = jax.random.split(key, 5)

    params = init_params(k_par, IN_NF, HID, OUT_NF)
    x = jax.random.normal(k_x, (B, N_NODES, IN_NF), jnp.float32)
    coord = jax.random.normal(k_c, (B, N_NODES, 3), jnp.float32)
    row = jax.random.randint(k_r, (B, N_EDGES), 0, N_NODES)
    col = jax.random.randint(k_col, (B, N_EDGES), 0, N_NODES)

    out = egnn_forward_batched(params, x, coord, row, col)
    out = jax.block_until_ready(out)
    assert out.shape == (B, OUT_NF), out.shape

    for b in range(B):
        ref = egnn_reference(params, x[b], coord[b], row[b], col[b])
        assert jnp.allclose(out[b], ref, atol=1e-3, rtol=1e-3), (b, out[b], ref)

    # single-graph entry point (matches the torch module's forward)
    single = egnn_forward(params, x[0], coord[0], row[0], col[0])
    single = jax.block_until_ready(single)
    assert single.shape == (OUT_NF,), single.shape
    assert jnp.allclose(single, out[0], atol=1e-5, rtol=1e-5), (single, out[0])

    print("KERNEL_OK")
</pallas_src>

<mosaic_0001>
module attributes {stable_mosaic.version = 11 : i64} {
  func.func @egnn_kernel(%arg0: i32, %arg1: memref<1x8x16xf32, #tpu.memory_space<vmem>>, %arg2: memref<1x8x3xf32, #tpu.memory_space<vmem>>, %arg3: memref<1x32x8xf32, #tpu.memory_space<vmem>>, %arg4: memref<1x8x16xf32, #tpu.memory_space<vmem>>, %arg5: memref<384x64xf32, #tpu.memory_space<vmem>>, %arg6: memref<1x1x1xf32, #tpu.memory_space<vmem>>) attributes {dimension_semantics = [#tpu.dimension_semantics<parallel>], iteration_bounds = array<i64: 4>, scalar_prefetch = 0 : i64, scratch_operands = 0 : i64, tpu.core_type = #tpu.core_type<tc>, window_params = [{transform_indices = @transform_0, window_bounds = array<i64: 1, 8, 16>}, {transform_indices = @transform_1, window_bounds = array<i64: 1, 8, 3>}, {transform_indices = @transform_2, window_bounds = array<i64: 1, 32, 8>}, {transform_indices = @transform_3, window_bounds = array<i64: 1, 8, 16>}, {pipeline_mode = #tpu.pipeline_mode<synchronous>, transform_indices = @transform_4, window_bounds = array<i64: 384, 64>}, {transform_indices = @transform_5, window_bounds = array<i64: 1, 1, 1>}]} {
    %c0 = arith.constant 0 : index
    %c0_0 = arith.constant 0 : index
    %c0_1 = arith.constant 0 : index
    %0 = vector.load %arg1[%c0, %c0_0, %c0_1] : memref<1x8x16xf32, #tpu.memory_space<vmem>>, vector<1x8x16xf32>
    %1 = vector.shape_cast %0 : vector<1x8x16xf32> to vector<8x16xf32>
    %c0_2 = arith.constant 0 : index
    %c0_3 = arith.constant 0 : index
    %c0_4 = arith.constant 0 : index
    %2 = vector.load %arg2[%c0_2, %c0_3, %c0_4] : memref<1x8x3xf32, #tpu.memory_space<vmem>>, vector<1x8x3xf32>
    %3 = vector.shape_cast %2 : vector<1x8x3xf32> to vector<8x3xf32>
    %c0_5 = arith.constant 0 : index
    %c0_6 = arith.constant 0 : index
    %c0_7 = arith.constant 0 : index
    %4 = vector.load %arg3[%c0_5, %c0_6, %c0_7] : memref<1x32x8xf32, #tpu.memory_space<vmem>>, vector<1x32x8xf32>
    %5 = vector.shape_cast %4 : vector<1x32x8xf32> to vector<32x8xf32>
    %c0_8 = arith.constant 0 : index
    %c0_9 = arith.constant 0 : index
    %c0_10 = arith.constant 0 : index
    %6 = vector.load %arg4[%c0_8, %c0_9, %c0_10] : memref<1x8x16xf32, #tpu.memory_space<vmem>>, vector<1x8x16xf32>
    %7 = vector.shape_cast %6 : vector<1x8x16xf32> to vector<8x16xf32>
    %c0_11 = arith.constant 0 : index
    %c0_12 = arith.constant 0 : index
    %8 = vector.load %arg5[%c0_11, %c0_12] : memref<384x64xf32, #tpu.memory_space<vmem>>, vector<16x32xf32>
    %cst = arith.constant dense<0.000000e+00> : vector<8x32xf32>
    %9 = tpu.matmul %1, %8, %cst {dimension_numbers = #tpu.dot_dimension_numbers<[1], [0], [0], [1], [0, 0, 1, 1], [], []>} : vector<8x16xf32>, vector<16x32xf32>, vector<8x32xf32> -> vector<8x32xf32>
    %c368 = arith.constant 368 : index
    %c0_13 = arith.constant 0 : index
    %10 = vector.load %arg5[%c368, %c0_13] : memref<384x64xf32, #tpu.memory_space<vmem>>, vector<1x32xf32>
    %11 = vector.broadcast %10 : vector<1x32xf32> to vector<8x32xf32>
    %12 = arith.addf %9, %11 : vector<8x32xf32>
    %13 = math.tanh %12 : vector<8x32xf32>
    %14 = arith.subf %12, %13 : vector<8x32xf32>
    %cst_14 = arith.constant dense<0.000000e+00> : vector<32x32xf32>
    %15 = tpu.matmul %5, %14, %cst_14 {dimension_numbers = #tpu.dot_dimension_numbers<[1], [0], [0], [1], [0, 0, 1, 1], [], []>} : vector<32x8xf32>, vector<8x32xf32>, vector<32x32xf32> -> vector<32x32xf32>
    %cst_15 = arith.constant dense<0.000000e+00> : vector<32x3xf32>
    %16 = tpu.matmul %5, %3, %cst_15 {dimension_numbers = #tpu.dot_dimension_numbers<[1], [0], [0], [1], [0, 0, 1, 1], [], []>} : vector<32x8xf32>, vector<8x3xf32>, vector<32x3xf32> -> vector<32x3xf32>
    %17 = vector.extract_strided_slice %15 {offsets = [0, 0], sizes = [16, 32], strides = [1, 1]} : vector<32x32xf32> to vector<16x32xf32>
    %18 = vector.extract_strided_slice %15 {offsets = [16, 0], sizes = [16, 32], strides = [1, 1]} : vector<32x32xf32> to vector<16x32xf32>
    %19 = vector.extract_strided_slice %16 {offsets = [0, 0], sizes = [16, 3], strides = [1, 1]} : vector<32x3xf32> to vector<16x3xf32>
    %20 = vector.extract_strided_slice %16 {offsets = [16, 0], sizes = [16, 3], strides = [1, 1]} : vector<32x3xf32> to vector<16x3xf32>
    %21 = arith.subf %19, %20 : vector<16x3xf32>
    %22 = arith.mulf %21, %21 : vector<16x3xf32>
    %cst_16 = arith.constant dense<0.000000e+00> : vector<16xf32>
    %23 = vector.multi_reduction <add>, %22, %cst_16 [1] : vector<16x3xf32> to vector<16xf32>
    %24 = vector.shape_cast %23 : vector<16xf32> to vector<16x1xf32>
    %c16 = arith.constant 16 : index
    %c0_17 = arith.constant 0 : index
    %25 = vector.load %arg5[%c16, %c0_17] : memref<384x64xf32, #tpu.memory_space<vmem>>, vector<32x64xf32>
    %cst_18 = arith.constant dense<0.000000e+00> : vector<16x64xf32>
    %26 = tpu.matmul %17, %25, %cst_18 {dimension_numbers = #tpu.dot_dimension_numbers<[1], [0], [0], [1], [0, 0, 1, 1], [], []>} : vector<16x32xf32>, vector<32x64xf32>, vector<16x64xf32> -> vector<16x64xf32>
    %c48 = arith.constant 48 : index
    %c0_19 = arith.constant 0 : index
    %27 = vector.load %arg5[%c48, %c0_19] : memref<384x64xf32, #tpu.memory_space<vmem>>, vector<32x64xf32>
    %cst_20 = arith.constant dense<0.000000e+00> : vector<16x64xf32>
    %28 = tpu.matmul %18, %27, %cst_20 {dimension_numbers = #tpu.dot_dimension_numbers<[1], [0], [0], [1], [0, 0, 1, 1], [], []>} : vector<16x32xf32>, vector<32x64xf32>, vector<16x64xf32> -> vector<16x64xf32>
    %29 = arith.addf %26, %28 : vector<16x64xf32>
    %c369 = arith.constant 369 : index
    %c0_21 = arith.constant 0 : index
    %30 = vector.load %arg5[%c369, %c0_21] : memref<384x64xf32, #tpu.memory_space<vmem>>, vector<1x64xf32>
    %31 = vector.broadcast %24 : vector<16x1xf32> to vector<16x64xf32>
    %32 = vector.broadcast %30 : vector<1x64xf32> to vector<16x64xf32>
    %33 = arith.mulf %31, %32 : vector<16x64xf32>
    %34 = arith.addf %29, %33 : vector<16x64xf32>
    %c370 = arith.constant 370 : index
    %c0_22 = arith.constant 0 : index
    %35 = vector.load %arg5[%c370, %c0_22] : memref<384x64xf32, #tpu.memory_space<vmem>>, vector<1x64xf32>
    %36 = vector.broadcast %35 : vector<1x64xf32> to vector<16x64xf32>
    %37 = arith.addf %34, %36 : vector<16x64xf32>
    %38 = math.tanh %37 : vector<16x64xf32>
    %39 = arith.subf %37, %38 : vector<16x64xf32>
    %c80 = arith.constant 80 : index
    %c0_23 = arith.constant 0 : index
    %40 = vector.load %arg5[%c80, %c0_23] : memref<384x64xf32, #tpu.memory_space<vmem>>, vector<64x33xf32>
    %cst_24 = arith.constant dense<0.000000e+00> : vector<16x33xf32>
    %41 = tpu.matmul %39, %40, %cst_24 {dimension_numbers = #tpu.dot_dimension_numbers<[1], [0], [0], [1], [0, 0, 1, 1], [], []>} : vector<16x64xf32>, vector<64x33xf32>, vector<16x33xf32> -> vector<16x33xf32>
    %c371 = arith.constant 371 : index
    %c0_25 = arith.constant 0 : index
    %42 = vector.load %arg5[%c371, %c0_25] : memref<384x64xf32, #tpu.memory_space<vmem>>, vector<1x33xf32>
    %43 = vector.broadcast %42 : vector<1x33xf32> to vector<16x33xf32>
    %44 = arith.addf %41, %43 : vector<16x33xf32>
    %45 = vector.extract_strided_slice %44 {offsets = [0, 0], sizes = [16, 32], strides = [1, 1]} : vector<16x33xf32> to vector<16x32xf32>
    %46 = math.tanh %45 : vector<16x32xf32>
    %47 = arith.subf %45, %46 : vector<16x32xf32>
    %48 = vector.extract_strided_slice %44 {offsets = [0, 32], sizes = [16, 1], strides = [1, 1]} : vector<16x33xf32> to vector<16x1xf32>
    %49 = arith.negf %48 : vector<16x1xf32>
    %50 = math.exp %49 : vector<16x1xf32>
    %cst_26 = arith.constant 1.000000e+00 : f32
    %51 = vector.broadcast %cst_26 : f32 to vector<16x1xf32>
    %52 = arith.addf %51, %50 : vector<16x1xf32>
    %53 = arith.divf %51, %52 : vector<16x1xf32>
    %54 = vector.broadcast %53 : vector<16x1xf32> to vector<16x32xf32>
    %55 = arith.mulf %47, %54 : vector<16x32xf32>
    %cst_27 = arith.constant dense<0.000000e+00> : vector<8x32xf32>
    %56 = tpu.matmul %7, %55, %cst_27 {dimension_numbers = #tpu.dot_dimension_numbers<[1], [0], [0], [1], [0, 0, 1, 1], [], []>} : vector<8x16xf32>, vector<16x32xf32>, vector<8x32xf32> -> vector<8x32xf32>
    %57 = tpu.concatenate %14, %56 in 1 : vector<8x32xf32>, vector<8x32xf32> -> vector<8x64xf32>
    %c144 = arith.constant 144 : index
    %c0_28 = arith.constant 0 : index
    %58 = vector.load %arg5[%c144, %c0_28] : memref<384x64xf32, #tpu.memory_space<vmem>>, vector<64x32xf32>
    %cst_29 = arith.constant dense<0.000000e+00> : vector<8x32xf32>
    %59 = tpu.matmul %57, %58, %cst_29 {dimension_numbers = #tpu.dot_dimension_numbers<[1], [0], [0], [1], [0, 0, 1, 1], [], []>} : vector<8x64xf32>, vector<64x32xf32>, vector<8x32xf32> -> vector<8x32xf32>
    %c372 = arith.constant 372 : index
    %c0_30 = arith.constant 0 : index
    %60 = vector.load %arg5[%c372, %c0_30] : memref<384x64xf32, #tpu.memory_space<vmem>>, vector<1x32xf32>
    %61 = vector.broadcast %60 : vector<1x32xf32> to vector<8x32xf32>
    %62 = arith.addf %59, %61 : vector<8x32xf32>
    %63 = math.tanh %62 : vector<8x32xf32>
    %64 = arith.subf %62, %63 : vector<8x32xf32>
    %c208 = arith.constant 208 : index
    %c0_31 = arith.constant 0 : index
    %65 = vector.load %arg5[%c208, %c0_31] : memref<384x64xf32, #tpu.memory_space<vmem>>, vector<32x32xf32>
    %cst_32 = arith.constant dense<0.000000e+00> : vector<8x32xf32>
    %66 = tpu.matmul %64, %65, %cst_32 {dimension_numbers = #tpu.dot_dimension_numbers<[1], [0], [0], [1], [0, 0, 1, 1], [], []>} : vector<8x32xf32>, vector<32x32xf32>, vector<8x32xf32> -> vector<8x32xf32>
    %c373 = arith.constant 373 : index
    %c0_33 = arith.constant 0 : index
    %67 = vector.load %arg5[%c373, %c0_33] : memref<384x64xf32, #tpu.memory_space<vmem>>, vector<1x32xf32>
    %68 = vector.broadcast %67 : vector<1x32xf32> to vector<8x32xf32>
    %69 = arith.addf %66, %68 : vector<8x32xf32>
    %70 = arith.addf %14, %69 : vector<8x32xf32>
    %c240 = arith.constant 240 : index
    %c0_34 = arith.constant 0 : index
    %71 = vector.load %arg5[%c240, %c0_34] : memref<384x64xf32, #tpu.memory_space<vmem>>, vector<32x32xf32>
    %cst_35 = arith.constant dense<0.000000e+00> : vector<8x32xf32>
    %72 = tpu.matmul %70, %71, %cst_35 {dimension_numbers = #tpu.dot_dimension_numbers<[1], [0], [0], [1], [0, 0, 1, 1], [], []>} : vector<8x32xf32>, vector<32x32xf32>, vector<8x32xf32> -> vector<8x32xf32>
    %c374 = arith.constant 374 : index
    %c0_36 = arith.constant 0 : index
    %73 = vector.load %arg5[%c374, %c0_36] : memref<384x64xf32, #tpu.memory_space<vmem>>, vector<1x32xf32>
    %74 = vector.broadcast %73 : vector<1x32xf32> to vector<8x32xf32>
    %75 = arith.addf %72, %74 : vector<8x32xf32>
    %76 = math.tanh %75 : vector<8x32xf32>
    %77 = arith.subf %75, %76 : vector<8x32xf32>
    %cst_37 = arith.constant dense<0.000000e+00> : vector<32xf32>
    %78 = vector.multi_reduction <add>, %77, %cst_37 [0] : vector<8x32xf32> to vector<32xf32>
    %79 = vector.shape_cast %78 : vector<32xf32> to vector<1x32xf32>
    %c272 = arith.constant 272 : index
    %c0_38 = arith.constant 0 : index
    %80 = vector.load %arg5[%c272, %c0_38] : memref<384x64xf32, #tpu.memory_space<vmem>>, vector<32x32xf32>
    %cst_39 = arith.constant dense<0.000000e+00> : vector<1x32xf32>
    %81 = tpu.matmul %79, %80, %cst_39 {dimension_numbers = #tpu.dot_dimension_numbers<[1], [0], [0], [1], [0, 0, 1, 1], [], []>} : vector<1x32xf32>, vector<32x32xf32>, vector<1x32xf32> -> vector<1x32xf32>
    %c375 = arith.constant 375 : index
    %c0_40 = arith.constant 0 : index
    %82 = vector.load %arg5[%c375, %c0_40] : memref<384x64xf32, #tpu.memory_space<vmem>>, vector<1x32xf32>
    %83 = arith.addf %81, %82 : vector<1x32xf32>
    %c304 = arith.constant 304 : index
    %c0_41 = arith.constant 0 : index
    %84 = vector.load %arg5[%c304, %c0_41] : memref<384x64xf32, #tpu.memory_space<vmem>>, vector<32x32xf32>
    %cst_42 = arith.constant dense<0.000000e+00> : vector<1x32xf32>
    %85 = tpu.matmul %83, %84, %cst_42 {dimension_numbers = #tpu.dot_dimension_numbers<[1], [0], [0], [1], [0, 0, 1, 1], [], []>} : vector<1x32xf32>, vector<32x32xf32>, vector<1x32xf32> -> vector<1x32xf32>
    %c376 = arith.constant 376 : index
    %c0_43 = arith.constant 0 : index
    %86 = vector.load %arg5[%c376, %c0_43] : memref<384x64xf32, #tpu.memory_space<vmem>>, vector<1x32xf32>
    %87 = arith.addf %85, %86 : vector<1x32xf32>
    %88 = math.tanh %87 : vector<1x32xf32>
    %89 = arith.subf %87, %88 : vector<1x32xf32>
    %c336 = arith.constant 336 : index
    %c0_44 = arith.constant 0 : index
    %90 = vector.load %arg5[%c336, %c0_44] : memref<384x64xf32, #tpu.memory_space<vmem>>, vector<32x1xf32>
    %cst_45 = arith.constant dense<0.000000e+00> : vector<1x1xf32>
    %91 = tpu.matmul %89, %90, %cst_45 {dimension_numbers = #tpu.dot_dimension_numbers<[1], [0], [0], [1], [0, 0, 1, 1], [], []>} : vector<1x32xf32>, vector<32x1xf32>, vector<1x1xf32> -> vector<1x1xf32>
    %c377 = arith.constant 377 : index
    %c0_46 = arith.constant 0 : index
    %92 = vector.load %arg5[%c377, %c0_46] : memref<384x64xf32, #tpu.memory_space<vmem>>, vector<1x1xf32>
    %93 = arith.addf %91, %92 : vector<1x1xf32>
    %c0_47 = arith.constant 0 : index
    %c0_48 = arith.constant 0 : index
    %c0_49 = arith.constant 0 : index
    %94 = vector.load %arg6[%c0_47, %c0_48, %c0_49] : memref<1x1x1xf32, #tpu.memory_space<vmem>>, vector<1x1x1xf32>
    %95 = vector.shape_cast %94 : vector<1x1x1xf32> to vector<1x1xf32>
    %96 = vector.shape_cast %93 : vector<1x1xf32> to vector<1x1x1xf32>
    tpu.vector_store %arg6[%c0_47, %c0_48, %c0_49], %96 {strides = array<i32>} : memref<1x1x1xf32, #tpu.memory_space<vmem>>, vector<1x1x1xf32>,
    return
  }
  func.func @transform_0(%arg0: i32) -> (i32, i32, i32) {
    %c0_i32 = arith.constant 0 : i32
    %c0_i32_0 = arith.constant 0 : i32
    %c0_i32_1 = arith.constant 0 : i32
    return %arg0, %c0_i32, %c0_i32_0 : i32, i32, i32
  }
  func.func @transform_1(%arg0: i32) -> (i32, i32, i32) {
    %c0_i32 = arith.constant 0 : i32
    %c0_i32_0 = arith.constant 0 : i32
    %c0_i32_1 = arith.constant 0 : i32
    return %arg0, %c0_i32, %c0_i32_0 : i32, i32, i32
  }
  func.func @transform_2(%arg0: i32) -> (i32, i32, i32) {
    %c0_i32 = arith.constant 0 : i32
    %c0_i32_0 = arith.constant 0 : i32
    %c0_i32_1 = arith.constant 0 : i32
    return %arg0, %c0_i32, %c0_i32_0 : i32, i32, i32
  }
  func.func @transform_3(%arg0: i32) -> (i32, i32, i32) {
    %c0_i32 = arith.constant 0 : i32
    %c0_i32_0 = arith.constant 0 : i32
    %c0_i32_1 = arith.constant 0 : i32
    return %arg0, %c0_i32, %c0_i32_0 : i32, i32, i32
  }
  func.func @transform_4(%arg0: i32) -> (i32, i32) {
    %c0_i32 = arith.constant 0 : i32
    %c0_i32_0 = arith.constant 0 : i32
    %c0_i32_1 = arith.constant 0 : i32
    return %c0_i32, %c0_i32_0 : i32, i32
  }
  func.func @transform_5(%arg0: i32) -> (i32, i32, i32) {
    %c0_i32 = arith.constant 0 : i32
    %c0_i32_0 = arith.constant 0 : i32
    %c0_i32_1 = arith.constant 0 : i32
    return %arg0, %c0_i32, %c0_i32_0 : i32, i32, i32
  }
}

</mosaic_0001>

<llo_original>
// kernel: tpu_custom_call.1
$region0: #{tpu_custom_call.1}
  #allocation0 [shape = 'u32[]', space=smem, size = 0x4, offset = 0x4, fixed_abs, tag = 'smem constant byte address 0x4 - core index']
  #allocation1 [shape = 'u32[144,128]{1,0:T(1,128)}', space=vmem, size = 0x12000, scoped, tag = 'internal scratch']
  %s0 = inlined_call_operand.vmem [shape: f32[4,8,16], index: 0, kind: input, shape index: {}]
  %s1 = inlined_call_operand.vmem [shape: f32[4,8,3], index: 1, kind: input, shape index: {}]
  %s2 = inlined_call_operand.vmem [shape: f32[4,32,8], index: 2, kind: input, shape index: {}]
  %s3 = inlined_call_operand.vmem [shape: f32[4,8,16], index: 3, kind: input, shape index: {}]
  %s4 = inlined_call_operand.vmem [shape: f32[384,64], index: 4, kind: input, shape index: {}]
  %s5 = inlined_call_operand.vmem [shape: f32[4,1,1], index: 5, kind: output, shape index: {}]
  %s6 = sld [smem:[#allocation0]]
  $region53: #{tpu_custom_call.1} parent=0
    _
  %s8 = ssub.s32 1, %s6
  %s9 = scalar_select 0, %s8, %s6
  loop: start=0, step=1, limit=6
  $region2: #{tpu_custom_call.1} parent=0 // loop_pre_header
    _
  $region3: #{tpu_custom_call.1} parent=0 // loop_header
    %s11 = sphi 0, %s15
    %p12 = scmp.ge.s32.totalorder %s11, 6
    %s21 = sphi 0, %s23
    %s24 = sphi 0, %s21
    %s25 = sphi 0, %s24
    %s41 = sphi 0, %s25
    %s47 = sphi 0, %s49
    %s50 = sphi 0, %s47
    %s51 = sphi 0, %s50
    %s67 = sphi 0, %s51
    %s73 = sphi 0, %s75
    %s76 = sphi 0, %s73
    %s77 = sphi 0, %s76
    %s93 = sphi 0, %s77
    %s99 = sphi 0, %s101
    %s102 = sphi 0, %s99
    %s103 = sphi 0, %s102
    %s119 = sphi 0, %s103
    %s123 = sphi 0, %s123
    %s125 = sphi 0, %s123
    %s126 = sphi 0, %s125
    %s140 = sphi 0, %s126
    %s146 = sphi 0, %s148
    %s149 = sphi 0, %s146
    %s150 = sphi 0, %s149
    %s166 = sphi 0, %s150
  $region4: #{tpu_custom_call.1} parent=0 // loop_header_branch
    %14 = sbr.rel (%p12) target = $region8
  $region5: #{tpu_custom_call.1} parent=0 // loop_body
    %s16 = ssub.s32 %s11, 1
    %s17 = ssub.s32 %s11, 2
    %s18 = sadd.s32 %s11, 1
    %s19 = ssub.s32 %s11, %s18
    %p20 = scmp.eq.s32.totalorder %s19, 0
    %s22 = sadd.s32 %s21, 1
    %s23 = scalar_select %p20, %s21, %s22
    %p26 = pneg %p20
    %p27 = scmp.eq.s32.totalorder %s11, 3
    %p28 = por %p26, %p27
    %p29 = scmp.ne.s32.totalorder %s21, %s24
    %p30 = scmp.eq.s32.totalorder %s11, 0
    %p31 = por %p29, %p30
    %p32 = scmp.ne.s32.totalorder %s21, %s24
    %p33 = scmp.eq.s32.totalorder %s16, 3
    %p34 = por %p32, %p33
    %p35 = scmp.ne.s32.totalorder %s24, %s25
    %p36 = scmp.eq.s32.totalorder %s16, 0
    %p37 = por %p35, %p36
    %p38 = scmp.ne.s32.totalorder %s24, %s25
    %p39 = scmp.eq.s32.totalorder %s17, 3
    %p40 = por %p38, %p39
    %p42 = scmp.ne.s32.totalorder %s25, %s41
    %p43 = scmp.eq.s32.totalorder %s17, 0
    %p44 = por %p42, %p43
    %s45 = ssub.s32 %s11, %s18
    %p46 = scmp.eq.s32.totalorder %s45, 0
    %s48 = sadd.s32 %s47, 1
    %s49 = scalar_select %p46, %s47, %s48
    %p52 = pneg %p46
    %p53 = scmp.eq.s32.totalorder %s11, 3
    %p54 = por %p52, %p53
    %p55 = scmp.ne.s32.totalorder %s47, %s50
    %p56 = scmp.eq.s32.totalorder %s11, 0
    %p57 = por %p55, %p56
    %p58 = scmp.ne.s32.totalorder %s47, %s50
    %p59 = scmp.eq.s32.totalorder %s16, 3
    %p60 = por %p58, %p59
    %p61 = scmp.ne.s32.totalorder %s50, %s51
    %p62 = scmp.eq.s32.totalorder %s16, 0
    %p63 = por %p61, %p62
    %p64 = scmp.ne.s32.totalorder %s50, %s51
    %p65 = scmp.eq.s32.totalorder %s17, 3
    %p66 = por %p64, %p65
    %p68 = scmp.ne.s32.totalorder %s51, %s67
    %p69 = scmp.eq.s32.totalorder %s17, 0
    %p70 = por %p68, %p69
    %s71 = ssub.s32 %s11, %s18
    %p72 = scmp.eq.s32.totalorder %s71, 0
    %s74 = sadd.s32 %s73, 1
    %s75 = scalar_select %p72, %s73, %s74
    %p78 = pneg %p72
    %p79 = scmp.eq.s32.totalorder %s11, 3
    %p80 = por %p78, %p79
    %p81 = scmp.ne.s32.totalorder %s73, %s76
    %p82 = scmp.eq.s32.totalorder %s11, 0
    %p83 = por %p81, %p82
    %p84 = scmp.ne.s32.totalorder %s73, %s76
    %p85 = scmp.eq.s32.totalorder %s16, 3
    %p86 = por %p84, %p85
    %p87 = scmp.ne.s32.totalorder %s76, %s77
    %p88 = scmp.eq.s32.totalorder %s16, 0
    %p89 = por %p87, %p88
    %p90 = scmp.ne.s32.totalorder %s76, %s77
    %p91 = scmp.eq.s32.totalorder %s17, 3
    %p92 = por %p90, %p91
    %p94 = scmp.ne.s32.totalorder %s77, %s93
    %p95 = scmp.eq.s32.totalorder %s17, 0
    %p96 = por %p94, %p95
    %s97 = ssub.s32 %s11, %s18
    %p98 = scmp.eq.s32.totalorder %s97, 0
    %s100 = sadd.s32 %s99, 1
    %s101 = scalar_select %p98, %s99, %s100
    %p104 = pneg %p98
    %p105 = scmp.eq.s32.totalorder %s11, 3
    %p106 = por %p104, %p105
    %p107 = scmp.ne.s32.totalorder %s99, %s102
    %p108 = scmp.eq.s32.totalorder %s11, 0
    %p109 = por %p107, %p108
    %p110 = scmp.ne.s32.totalorder %s99, %s102
    %p111 = scmp.eq.s32.totalorder %s16, 3
    %p112 = por %p110, %p111
    %p113 = scmp.ne.s32.totalorder %s102, %s103
    %p114 = scmp.eq.s32.totalorder %s16, 0
    %p115 = por %p113, %p114
    %p116 = scmp.ne.s32.totalorder %s102, %s103
    %p117 = scmp.eq.s32.totalorder %s17, 3
    %p118 = por %p116, %p117
    %p120 = scmp.ne.s32.totalorder %s103, %s119
    %p121 = scmp.eq.s32.totalorder %s17, 0
    %p122 = por %p120, %p121
    %s124 = sadd.s32 %s123, 1
    %p127 = scmp.eq.s32.totalorder %s11, 3
    %p128 = scmp.ne.s32.totalorder %s123, %s125
    %p129 = scmp.eq.s32.totalorder %s11, 0
    %p130 = por %p128, %p129
    %p131 = scmp.ne.s32.totalorder %s123, %s125
    %p132 = scmp.eq.s32.totalorder %s16, 3
    %p133 = por %p131, %p132
    %p134 = scmp.ne.s32.totalorder %s125, %s126
    %p135 = scmp.eq.s32.totalorder %s16, 0
    %p136 = por %p134, %p135
    %p137 = scmp.ne.s32.totalorder %s125, %s126
    %p138 = scmp.eq.s32.totalorder %s17, 3
    %p139 = por %p137, %p138
    %p141 = scmp.ne.s32.totalorder %s126, %s140
    %p142 = scmp.eq.s32.totalorder %s17, 0
    %p143 = por %p141, %p142
    %s144 = ssub.s32 %s11, %s18
    %p145 = scmp.eq.s32.totalorder %s144, 0
    %s147 = sadd.s32 %s146, 1
    %s148 = scalar_select %p145, %s146, %s147
    %p151 = pneg %p145
    %p152 = scmp.eq.s32.totalorder %s11, 3
    %p153 = por %p151, %p152
    %p154 = scmp.ne.s32.totalorder %s146, %s149
    %p155 = scmp.eq.s32.totalorder %s11, 0
    %p156 = por %p154, %p155
    %p157 = scmp.ne.s32.totalorder %s146, %s149
    %p158 = scmp.eq.s32.totalorder %s16, 3
    %p159 = por %p157, %p158
    %p160 = scmp.ne.s32.totalorder %s149, %s150
    %p161 = scmp.eq.s32.totalorder %s16, 0
    %p162 = por %p160, %p161
    %p163 = scmp.ne.s32.totalorder %s149, %s150
    %p164 = scmp.eq.s32.totalorder %s17, 3
    %p165 = por %p163, %p164
    %p167 = scmp.ne.s32.totalorder %s150, %s166
    %p168 = scmp.eq.s32.totalorder %s17, 0
    %p169 = por %p167, %p168
    %p170 = scmp.le.s32.totalorder 1, %s11
    %p171 = scmp.lt.s32.totalorder %s11, 5
    %p172 = pnand %p170, %p171
    %p173 = pneg %p172
    // Predicated region
    $region9: #{tpu_custom_call.1} parent=5 // pred_check
      _
    $region10: #{tpu_custom_call.1} parent=5 // pred_check_branch
      %175 = sbr.rel (%p172) target = $region12
    $region11: #{tpu_custom_call.1} parent=5 // pred_region
      %s176 = ssub.s32 %s11, 1
      // Predicated region
      $region13: #{tpu_custom_call.1} parent=11 // pred_check
        %p177 = pneg %p136
      $region14: #{tpu_custom_call.1} parent=11 // pred_check_branch
        %179 = sbr.rel (%p177) target = $region16
      $region15: #{tpu_custom_call.1} parent=11 // pred_region
        _
      $region16: #{tpu_custom_call.1} parent=11 // pred_fallthru
        _
    $region12: #{tpu_custom_call.1} parent=5 // pred_fallthru
      _
    %p180 = scmp.lt.s32.totalorder %s11, 4
    // Predicated region
    $region17: #{tpu_custom_call.1} parent=5 // pred_check
      %p181 = pneg %p180
    $region18: #{tpu_custom_call.1} parent=5 // pred_check_branch
      %183 = sbr.rel (%p181) target = $region20
    $region19: #{tpu_custom_call.1} parent=5 // pred_region
      // Predicated region
      $region21: #{tpu_custom_call.1} parent=19 // pred_check
        %p184 = pneg %p31
      $region22: #{tpu_custom_call.1} parent=19 // pred_check_branch
        %186 = sbr.rel (%p184) target = $region24
      $region23: #{tpu_custom_call.1} parent=19 // pred_region
        %p187 = scmp.lt.s32.totalorder %s11, 3
        %s188 = scalar_select %p187, %s11, 3
        %s189 = smul.addr %s188, 8
        %s190 = scalar_lea.vmem %s0, %s189
      $region24: #{tpu_custom_call.1} parent=19 // pred_fallthru
        _
      // Predicated region
      $region25: #{tpu_custom_call.1} parent=19 // pred_check
        %p191 = pneg %p57
      $region26: #{tpu_custom_call.1} parent=19 // pred_check_branch
        %193 = sbr.rel (%p191) target = $region28
      $region27: #{tpu_custom_call.1} parent=19 // pred_region
        %p194 = scmp.lt.s32.totalorder %s11, 3
        %s195 = scalar_select %p194, %s11, 3
        %s196 = smul.addr %s195, 8
        %s197 = scalar_lea.vmem %s1, %s196
      $region28: #{tpu_custom_call.1} parent=19 // pred_fallthru
        _
      // Predicated region
      $region29: #{tpu_custom_call.1} parent=19 // pred_check
        %p198 = pneg %p83
      $region30: #{tpu_custom_call.1} parent=19 // pred_check_branch
        %200 = sbr.rel (%p198) target = $region32
      $region31: #{tpu_custom_call.1} parent=19 // pred_region
        %p201 = scmp.lt.s32.totalorder %s11, 3
        %s202 = scalar_select %p201, %s11, 3
        %s203 = smul.addr %s202, 4
        %s204 = smul.addr %s203, 8
        %s205 = scalar_lea.vmem %s2, %s204
      $region32: #{tpu_custom_call.1} parent=19 // pred_fallthru
        _
      // Predicated region
      $region33: #{tpu_custom_call.1} parent=19 // pred_check
        %p206 = pneg %p109
      $region34: #{tpu_custom_call.1} parent=19 // pred_check_branch
        %208 = sbr.rel (%p206) target = $region36
      $region35: #{tpu_custom_call.1} parent=19 // pred_region
        %p209 = scmp.lt.s32.totalorder %s11, 3
        %s210 = scalar_select %p209, %s11, 3
        %s211 = smul.addr %s210, 8
        %s212 = scalar_lea.vmem %s3, %s211
      $region36: #{tpu_custom_call.1} parent=19 // pred_fallthru
        _
    $region20: #{tpu_custom_call.1} parent=5 // pred_fallthru
      _
    %p213 = scmp.le.s32.totalorder 1, %s11
    %p214 = scmp.lt.s32.totalorder %s11, 5
    %p215 = pnand %p213, %p214
    %p216 = pneg %p215
    // Predicated region
    $region37: #{tpu_custom_call.1} parent=5 // pred_check
      _
    $region38: #{tpu_custom_call.1} parent=5 // pred_check_branch
      %218 = sbr.rel (%p215) target = $region40
    $region39: #{tpu_custom_call.1} parent=5 // pred_region
      %s219 = ssub.s32 %s11, 1
      %p220 = scmp.lt.s32.totalorder %s16, 3
      %s221 = scalar_select %p220, %s16, 3
      %s222 = smul.addr %s221, 8
      %s223 = scalar_lea.vmem %s0, %s222
      %p224 = pneg %p37
      %p225 = pneg %p34
      %p226 = scmp.lt.s32.totalorder %s16, 3
      %s227 = scalar_select %p226, %s16, 3
      %s228 = smul.addr %s227, 8
      %s229 = scalar_lea.vmem %s1, %s228
      %p230 = pneg %p63
      %p231 = pneg %p60
      %p232 = scmp.lt.s32.totalorder %s16, 3
      %s233 = scalar_select %p232, %s16, 3
      %s234 = smul.addr %s233, 4
      %s235 = smul.addr %s234, 8
      %s236 = scalar_lea.vmem %s2, %s235
      %p237 = pneg %p89
      %p238 = pneg %p86
      %p239 = scmp.lt.s32.totalorder %s16, 3
      %s240 = scalar_select %p239, %s16, 3
      %s241 = smul.addr %s240, 8
      %s242 = scalar_lea.vmem %s3, %s241
      %p243 = pneg %p115
      %p244 = pneg %p112
      %p245 = pneg %p136
      %p246 = pneg %p133
      %p247 = pneg %p162
      %p248 = pneg %p159
      %p249 = scmp.lt.s32.totalorder %s16, 3
      %s250 = scalar_select %p249, %s16, 3
      %s251 = scalar_lea.vmem %s5, %s250
      %p252 = scmp.lt.s32.totalorder %s16, 3
      %s253 = scalar_select %p252, %s16, 3
      %s254 = smul.addr %s253, 8
      %s255 = scalar_lea.vmem %s0, %s254
      %p256 = scmp.lt.s32.totalorder %s16, 3
      %s257 = scalar_select %p256, %s16, 3
      %s258 = smul.addr %s257, 8
      %s259 = scalar_lea.vmem %s1, %s258
      %p260 = scmp.lt.s32.totalorder %s16, 3
      %s261 = scalar_select %p260, %s16, 3
      %s262 = smul.addr %s261, 4
      %s263 = smul.addr %s262, 8
      %s264 = scalar_lea.vmem %s2, %s263
      %p265 = scmp.lt.s32.totalorder %s16, 3
      %s266 = scalar_select %p265, %s16, 3
      %s267 = smul.addr %s266, 8
      %s268 = scalar_lea.vmem %s3, %s267
      %p269 = scmp.lt.s32.totalorder %s16, 3
      %s270 = scalar_select %p269, %s16, 3
      %s271 = scalar_lea.vmem %s5, %s270
      %v272 = vld [vmem:[%s255] sm:$0xff]
      %v273 = vld [vmem:[%s259] sm:$0xff]
      %v274 = vld [vmem:[%s264] sm:$0xff]
      %v275 = vld [vmem:[%s264 + $0x8] sm:$0xff]
      %v276 = vld [vmem:[%s264 + $0x10] sm:$0xff]
      %v277 = vld [vmem:[%s264 + $0x18] sm:$0xff]
      %v278 = vld [vmem:[%s268] sm:$0xff]
      %v279 = vld [vmem:[%s4] sm:$0xff]
      %v280 = vld [vmem:[%s4 + $0x8] sm:$0xff]
      %v281 = vld [vmem:[%s4 + $0x170] sm:$0x1]
      %v282 = vlaneseq
      %v283 = vshrl.u32 %v282, 7
      %v284 = vsub.s32 0, %v283
      %v285 = vrot.slane %v281, %v284
      %vm286 = vcmask 130048
      %v288 = vsel %vm286, %v272, 0
      %290 = vmatprep.subr.mxu0 0.0
      %291 = vmatpush1.msra.mxu0 %v279
      %292 = vmatprep.subr.mxu0 0.0
      %293 = vmatpush1.msra.mxu0 %v280
      %294 = vmatprep.subr.mxu0 0.0
      %295 = vmatpush1.msra.mxu0 0.0
      %296 = vmatprep.subr.mxu0 0.0
      %297 = vmatpush1.msra.mxu0 0.0
      %298 = vmatprep.subr.mxu0 0.0
      %299 = vmatpush1.msra.mxu0 0.0
      %300 = vmatprep.subr.mxu0 0.0
      %301 = vmatpush1.msra.mxu0 0.0
      %302 = vmatprep.subr.mxu0 0.0
      %303 = vmatpush1.msra.mxu0 0.0
      %304 = vmatprep.subr.mxu0 0.0
      %305 = vmatpush1.msra.mxu0 0.0
      %306 = vmatprep.subr.mxu0 0.0
      %307 = vmatpush1.msra.mxu0 0.0
      %308 = vmatprep.subr.mxu0 0.0
      %309 = vmatpush1.msra.mxu0 0.0
      %310 = vmatprep.subr.mxu0 0.0
      %311 = vmatpush1.msra.mxu0 0.0
      %312 = vmatprep.subr.mxu0 0.0
      %313 = vmatpush1.msra.mxu0 0.0
      %314 = vmatprep.subr.mxu0 0.0
      %315 = vmatpush1.msra.mxu0 0.0
      %316 = vmatprep.subr.mxu0 0.0
      %317 = vmatpush1.msra.mxu0 0.0
      %318 = vmatprep.subr.mxu0 0.0
      %319 = vmatpush1.msra.mxu0 0.0
      %320 = vmatprep.subr.mxu0 0.0
      %321 = vmatpush1.msra.mxu0 0.0
      %322 = vmatprep.subr.mxu0 0.0
      %323 = vmatpush1.msra.mxu0 0.0
      %324 = vmatprep.subr.mxu0 0.0
      %325 = vmatpush1.msra.mxu0 0.0
      %326 = vmatprep.subr.mxu0 0.0
      %327 = vmatpush1.msra.mxu0 0.0
      %328 = vmatprep.subr.mxu0 0.0
      %329 = vmatpush1.msra.mxu0 0.0
      %330 = vmatprep.subr.mxu0 0.0
      %331 = vmatpush1.msra.mxu0 0.0
      %332 = vmatprep.subr.mxu0 0.0
      %333 = vmatpush1.msra.mxu0 0.0
      %334 = vmatprep.subr.mxu0 0.0
      %335 = vmatpush1.msra.mxu0 0.0
      %336 = vmatprep.subr.mxu0 0.0
      %337 = vmatpush1.msra.mxu0 0.0
      %338 = vmatprep.subr.mxu0 0.0
      %339 = vmatpush1.msra.mxu0 0.0
      %340 = vmatprep.subr.mxu0 0.0
      %341 = vmatpush1.msra.mxu0 0.0
      %342 = vmatprep.subr.mxu0 0.0
      %343 = vmatpush1.msra.mxu0 0.0
      %344 = vmatprep.subr.mxu0 0.0
      %345 = vmatpush1.msra.mxu0 0.0
      %346 = vmatprep.subr.mxu0 0.0
      %347 = vmatpush1.msra.mxu0 0.0
      %348 = vmatprep.subr.mxu0 0.0
      %349 = vmatpush1.msra.mxu0 0.0
      %350 = vmatprep.subr.mxu0 0.0
      %351 = vmatpush1.msra.mxu0 0.0
      %352 = vmatprep.subr.mxu0 0.0
      %353 = vmatpush1.msra.mxu0 0.0
      %354 = vmatprep.mubr.f32.mxu0 0.0
      %355 = vmatmul.mubr.f32.gmra.mrb[0].mxu0 %v288
      %v356 = vpop.f32.mrb[0].mxu0
      %v357 = vadd.f32 %v285, %v356
      %v358 = vpop.f32.mrb[0].mxu0
      %359 = vdwg.mxu0
      %v360 = vtanh.pop %v357
      %v361 = vsub.f32 %v357, %v360
      %vm362 = vcmask 64512
      %v364 = vsel %vm362, %v274, 0
      %v367 = vsel %vm362, %v275, 0
      %v370 = vsel %vm362, %v276, 0
      %v373 = vsel %vm362, %v277, 0
      %375 = vmatprep.subr.mxu0 0.0
      %376 = vmatpush1.msra.mxu0 %v361
      %377 = vmatprep.subr.mxu0 0.0
      %378 = vmatpush1.msra.mxu0 0.0
      %379 = vmatprep.subr.mxu0 0.0
      %380 = vmatpush1.msra.mxu0 0.0
      %381 = vmatprep.subr.mxu0 0.0
      %382 = vmatpush1.msra.mxu0 0.0
      %383 = vmatprep.subr.mxu0 0.0
      %384 = vmatpush1.msra.mxu0 0.0
      %385 = vmatprep.subr.mxu0 0.0
      %386 = vmatpush1.msra.mxu0 0.0
      %387 = vmatprep.subr.mxu0 0.0
      %388 = vmatpush1.msra.mxu0 0.0
      %389 = vmatprep.subr.mxu0 0.0
      %390 = vmatpush1.msra.mxu0 0.0
      %391 = vmatprep.subr.mxu0 0.0
      %392 = vmatpush1.msra.mxu0 0.0
      %393 = vmatprep.subr.mxu0 0.0
      %394 = vmatpush1.msra.mxu0 0.0
      %395 = vmatprep.subr.mxu0 0.0
      %396 = vmatpush1.msra.mxu0 0.0
      %397 = vmatprep.subr.mxu0 0.0
      %398 = vmatpush1.msra.mxu0 0.0
      %399 = vmatprep.subr.mxu0 0.0
      %400 = vmatpush1.msra.mxu0 0.0
      %401 = vmatprep.subr.mxu0 0.0
      %402 = vmatpush1.msra.mxu0 0.0
      %403 = vmatprep.subr.mxu0 0.0
      %404 = vmatpush1.msra.mxu0 0.0
      %405 = vmatprep.subr.mxu0 0.0
      %406 = vmatpush1.msra.mxu0 0.0
      %407 = vmatprep.subr.mxu0 0.0
      %408 = vmatpush1.msra.mxu0 0.0
      %409 = vmatprep.subr.mxu0 0.0
      %410 = vmatpush1.msra.mxu0 0.0
      %411 = vmatprep.subr.mxu0 0.0
      %412 = vmatpush1.msra.mxu0 0.0
      %413 = vmatprep.subr.mxu0 0.0
      %414 = vmatpush1.msra.mxu0 0.0
      %415 = vmatprep.subr.mxu0 0.0
      %416 = vmatpush1.msra.mxu0 0.0
      %417 = vmatprep.subr.mxu0 0.0
      %418 = vmatpush1.msra.mxu0 0.0
      %419 = vmatprep.subr.mxu0 0.0
      %420 = vmatpush1.msra.mxu0 0.0
      %421 = vmatprep.subr.mxu0 0.0
      %422 = vmatpush1.msra.mxu0 0.0
      %423 = vmatprep.subr.mxu0 0.0
      %424 = vmatpush1.msra.mxu0 0.0
      %425 = vmatprep.subr.mxu0 0.0
      %426 = vmatpush1.msra.mxu0 0.0
      %427 = vmatprep.subr.mxu0 0.0
      %428 = vmatpush1.msra.mxu0 0.0
      %429 = vmatprep.subr.mxu0 0.0
      %430 = vmatpush1.msra.mxu0 0.0
      %431 = vmatprep.subr.mxu0 0.0
      %432 = vmatpush1.msra.mxu0 0.0
      %433 = vmatprep.subr.mxu0 0.0
      %434 = vmatpush1.msra.mxu0 0.0
      %435 = vmatprep.subr.mxu0 0.0
      %436 = vmatpush1.msra.mxu0 0.0
      %437 = vmatprep.subr.mxu0 0.0
      %438 = vmatpush1.msra.mxu0 0.0
      %439 = vmatprep.mubr.f32.mxu0 0.0
      %440 = vmatmul.mubr.f32.gmra.mrb[0].mxu0 %v364
      %v441 = vpop.f32.mrb[0].mxu0
      %v442 = vadd.f32 0.0, %v441
      %v443 = vpop.f32.mrb[0].mxu0
      %444 = vmatprep.mubr.f32.mxu0 0.0
      %445 = vmatmul.mubr.f32.gmra.mrb[0].mxu0 %v367
      %v446 = vpop.f32.mrb[0].mxu0
      %v447 = vadd.f32 0.0, %v446
      %v448 = vpop.f32.mrb[0].mxu0
      %449 = vmatprep.mubr.f32.mxu0 0.0
      %450 = vmatmul.mubr.f32.gmra.mrb[0].mxu0 %v370
      %v451 = vpop.f32.mrb[0].mxu0
      %v452 = vadd.f32 0.0, %v451
      %v453 = vpop.f32.mrb[0].mxu0
      %454 = vmatprep.mubr.f32.mxu0 0.0
      %455 = vmatmul.mubr.f32.gmra.mrb[0].mxu0 %v373
      %v456 = vpop.f32.mrb[0].mxu0
      %v457 = vadd.f32 0.0, %v456
      %v458 = vpop.f32.mrb[0].mxu0
      %459 = vdwg.mxu0
      %460 = vmatprep.subr.mxu0 0.0
      %461 = vmatpush1.msra.mxu0 %v273
      %462 = vmatprep.subr.mxu0 0.0
      %463 = vmatpush1.msra.mxu0 0.0
      %464 = vmatprep.subr.mxu0 0.0
      %465 = vmatpush1.msra.mxu0 0.0
      %466 = vmatprep.subr.mxu0 0.0
      %467 = vmatpush1.msra.mxu0 0.0
      %468 = vmatprep.subr.mxu0 0.0
      %469 = vmatpush1.msra.mxu0 0.0
      %470 = vmatprep.subr.mxu0 0.0
      %471 = vmatpush1.msra.mxu0 0.0
      %472 = vmatprep.subr.mxu0 0.0
      %473 = vmatpush1.msra.mxu0 0.0
      %474 = vmatprep.subr.mxu0 0.0
      %475 = vmatpush1.msra.mxu0 0.0
      %476 = vmatprep.subr.mxu0 0.0
      %477 = vmatpush1.msra.mxu0 0.0
      %478 = vmatprep.subr.mxu0 0.0
      %479 = vmatpush1.msra.mxu0 0.0
      %480 = vmatprep.subr.mxu0 0.0
      %481 = vmatpush1.msra.mxu0 0.0
      %482 = vmatprep.subr.mxu0 0.0
      %483 = vmatpush1.msra.mxu0 0.0
      %484 = vmatprep.subr.mxu0 0.0
      %485 = vmatpush1.msra.mxu0 0.0
      %486 = vmatprep.subr.mxu0 0.0
      %487 = vmatpush1.msra.mxu0 0.0
      %488 = vmatprep.subr.mxu0 0.0
      %489 = vmatpush1.msra.mxu0 0.0
      %490 = vmatprep.subr.mxu0 0.0
      %491 = vmatpush1.msra.mxu0 0.0
      %492 = vmatprep.subr.mxu0 0.0
      %493 = vmatpush1.msra.mxu0 0.0
      %494 = vmatprep.subr.mxu0 0.0
      %495 = vmatpush1.msra.mxu0 0.0
      %496 = vmatprep.subr.mxu0 0.0
      %497 = vmatpush1.msra.mxu0 0.0
      %498 = vmatprep.subr.mxu0 0.0
      %499 = vmatpush1.msra.mxu0 0.0
      %500 = vmatprep.subr.mxu0 0.0
      %501 = vmatpush1.msra.mxu0 0.0
      %502 = vmatprep.subr.mxu0 0.0
      %503 = vmatpush1.msra.mxu0 0.0
      %504 = vmatprep.subr.mxu0 0.0
      %505 = vmatpush1.msra.mxu0 0.0
      %506 = vmatprep.subr.mxu0 0.0
      %507 = vmatpush1.msra.mxu0 0.0
      %508 = vmatprep.subr.mxu0 0.0
      %509 = vmatpush1.msra.mxu0 0.0
      %510 = vmatprep.subr.mxu0 0.0
      %511 = vmatpush1.msra.mxu0 0.0
      %512 = vmatprep.subr.mxu0 0.0
      %513 = vmatpush1.msra.mxu0 0.0
      %514 = vmatprep.subr.mxu0 0.0
      %515 = vmatpush1.msra.mxu0 0.0
      %516 = vmatprep.subr.mxu0 0.0
      %517 = vmatpush1.msra.mxu0 0.0
      %518 = vmatprep.subr.mxu0 0.0
      %519 = vmatpush1.msra.mxu0 0.0
      %520 = vmatprep.subr.mxu0 0.0
      %521 = vmatpush1.msra.mxu0 0.0
      %522 = vmatprep.subr.mxu0 0.0
      %523 = vmatpush1.msra.mxu0 0.0
      %524 = vmatprep.mubr.f32.mxu0 0.0
      %525 = vmatmul.mubr.f32.gmra.mrb[0].mxu0 %v364
      %v526 = vpop.f32.mrb[0].mxu0
      %v527 = vadd.f32 0.0, %v526
      %v528 = vpop.f32.mrb[0].mxu0
      %529 = vmatprep.mubr.f32.mxu0 0.0
      %530 = vmatmul.mubr.f32.gmra.mrb[0].mxu0 %v367
      %v531 = vpop.f32.mrb[0].mxu0
      %v532 = vadd.f32 0.0, %v531
      %v533 = vpop.f32.mrb[0].mxu0
      %534 = vmatprep.mubr.f32.mxu0 0.0
      %535 = vmatmul.mubr.f32.gmra.mrb[0].mxu0 %v370
      %v536 = vpop.f32.mrb[0].mxu0
      %v537 = vadd.f32 0.0, %v536
      %v538 = vpop.f32.mrb[0].mxu0
      %539 = vmatprep.mubr.f32.mxu0 0.0
      %540 = vmatmul.mubr.f32.gmra.mrb[0].mxu0 %v373
      %v541 = vpop.f32.mrb[0].mxu0
      %v542 = vadd.f32 0.0, %v541
      %v543 = vpop.f32.mrb[0].mxu0
      %544 = vdwg.mxu0
      %v545 = vsub.f32 %v527, %v537
      %v546 = vsub.f32 %v532, %v542
      %v547 = vmul.f32 %v545, %v545
      %v548 = vmul.f32 %v546, %v546
      %vm549 = vcmask 23552
      %v550 = vsel %vm549, %v547, 0.0
      %551 = vadd.xlane.f32.xlu0 %v550
      %v552 = vpop.xlane.xlu0 %551
      %v553 = vsel %vm549, %v548, 0.0
      %554 = vadd.xlane.f32.xlu0 %v553
      %v555 = vpop.xlane.xlu0 %554
      %v556 = vld [vmem:[%s4 + $0x10] sm:$0xff]
      %v557 = vld [vmem:[%s4 + $0x18] sm:$0xff]
      %v558 = vld [vmem:[%s4 + $0x20] sm:$0xff]
      %v559 = vld [vmem:[%s4 + $0x28] sm:$0xff]
      %v560 = vld [vmem:[%s4 + $0x30] sm:$0xff]
      %v561 = vld [vmem:[%s4 + $0x38] sm:$0xff]
      %v562 = vld [vmem:[%s4 + $0x40] sm:$0xff]
      %v563 = vld [vmem:[%s4 + $0x48] sm:$0xff]
      %vm564 = vcmask 261120
      %v566 = vsel %vm564, %v452, 0
      %v569 = vsel %vm564, %v457, 0
      %571 = vmatprep.subr.mxu0 0.0
      %572 = vmatpush1.msra.mxu0 %v560
      %573 = vmatprep.subr.mxu0 0.0
      %574 = vmatpush1.msra.mxu0 %v561
      %575 = vmatprep.subr.mxu0 0.0
      %576 = vmatpush1.msra.mxu0 %v562
      %577 = vmatprep.subr.mxu0 0.0
      %578 = vmatpush1.msra.mxu0 %v563
      %579 = vmatprep.subr.mxu0 0.0
      %580 = vmatpush1.msra.mxu0 0.0
      %581 = vmatprep.subr.mxu0 0.0
      %582 = vmatpush1.msra.mxu0 0.0
      %583 = vmatprep.subr.mxu0 0.0
      %584 = vmatpush1.msra.mxu0 0.0
      %585 = vmatprep.subr.mxu0 0.0
      %586 = vmatpush1.msra.mxu0 0.0
      %587 = vmatprep.subr.mxu0 0.0
      %588 = vmatpush1.msra.mxu0 0.0
      %589 = vmatprep.subr.mxu0 0.0
      %590 = vmatpush1.msra.mxu0 0.0
      %591 = vmatprep.subr.mxu0 0.0
      %592 = vmatpush1.msra.mxu0 0.0
      %593 = vmatprep.subr.mxu0 0.0
      %594 = vmatpush1.msra.mxu0 0.0
      %595 = vmatprep.subr.mxu0 0.0
      %596 = vmatpush1.msra.mxu0 0.0
      %597 = vmatprep.subr.mxu0 0.0
      %598 = vmatpush1.msra.mxu0 0.0
      %599 = vmatprep.subr.mxu0 0.0
      %600 = vmatpush1.msra.mxu0 0.0
      %601 = vmatprep.subr.mxu0 0.0
      %602 = vmatpush1.msra.mxu0 0.0
      %603 = vmatprep.subr.mxu0 0.0
      %604 = vmatpush1.msra.mxu0 0.0
      %605 = vmatprep.subr.mxu0 0.0
      %606 = vmatpush1.msra.mxu0 0.0
      %607 = vmatprep.subr.mxu0 0.0
      %608 = vmatpush1.msra.mxu0 0.0
      %609 = vmatprep.subr.mxu0 0.0
      %610 = vmatpush1.msra.mxu0 0.0
      %611 = vmatprep.subr.mxu0 0.0
      %612 = vmatpush1.msra.mxu0 0.0
      %613 = vmatprep.subr.mxu0 0.0
      %614 = vmatpush1.msra.mxu0 0.0
      %615 = vmatprep.subr.mxu0 0.0
      %616 = vmatpush1.msra.mxu0 0.0
      %617 = vmatprep.subr.mxu0 0.0
      %618 = vmatpush1.msra.mxu0 0.0
      %619 = vmatprep.subr.mxu0 0.0
      %620 = vmatpush1.msra.mxu0 0.0
      %621 = vmatprep.subr.mxu0 0.0
      %622 = vmatpush1.msra.mxu0 0.0
      %623 = vmatprep.subr.mxu0 0.0
      %624 = vmatpush1.msra.mxu0 0.0
      %625 = vmatprep.subr.mxu0 0.0
      %626 = vmatpush1.msra.mxu0 0.0
      %627 = vmatprep.subr.mxu0 0.0
      %628 = vmatpush1.msra.mxu0 0.0
      %629 = vmatprep.subr.mxu0 0.0
      %630 = vmatpush1.msra.mxu0 0.0
      %631 = vmatprep.subr.mxu0 0.0
      %632 = vmatpush1.msra.mxu0 0.0
      %633 = vmatprep.subr.mxu0 0.0
      %634 = vmatpush1.msra.mxu0 0.0
      %635 = vmatprep.mubr.f32.mxu0 0.0
      %636 = vmatmul.mubr.f32.gmra.mrb[0].mxu0 %v566
      %v637 = vpop.f32.mrb[0].mxu0
      %v638 = vadd.f32 0.0, %v637
      %v639 = vpop.f32.mrb[0].mxu0
      %640 = vmatprep.mubr.f32.mxu0 0.0
      %641 = vmatmul.mubr.f32.gmra.mrb[0].mxu0 %v569
      %v642 = vpop.f32.mrb[0].mxu0
      %v643 = vadd.f32 0.0, %v642
      %v644 = vpop.f32.mrb[0].mxu0
      %645 = vdwg.mxu0
      %v647 = vsel %vm564, %v442, 0
      %v650 = vsel %vm564, %v447, 0
      %652 = vmatprep.subr.mxu0 0.0
      %653 = vmatpush1.msra.mxu0 %v556
      %654 = vmatprep.subr.mxu0 0.0
      %655 = vmatpush1.msra.mxu0 %v557
      %656 = vmatprep.subr.mxu0 0.0
      %657 = vmatpush1.msra.mxu0 %v558
      %658 = vmatprep.subr.mxu0 0.0
      %659 = vmatpush1.msra.mxu0 %v559
      %660 = vmatprep.subr.mxu0 0.0
      %661 = vmatpush1.msra.mxu0 0.0
      %662 = vmatprep.subr.mxu0 0.0
      %663 = vmatpush1.msra.mxu0 0.0
      %664 = vmatprep.subr.mxu0 0.0
      %665 = vmatpush1.msra.mxu0 0.0
      %666 = vmatprep.subr.mxu0 0.0
      %667 = vmatpush1.msra.mxu0 0.0
      %668 = vmatprep.subr.mxu0 0.0
      %669 = vmatpush1.msra.mxu0 0.0
      %670 = vmatprep.subr.mxu0 0.0
      %671 = vmatpush1.msra.mxu0 0.0
      %672 = vmatprep.subr.mxu0 0.0
      %673 = vmatpush1.msra.mxu0 0.0
      %674 = vmatprep.subr.mxu0 0.0
      %675 = vmatpush1.msra.mxu0 0.0
      %676 = vmatprep.subr.mxu0 0.0
      %677 = vmatpush1.msra.mxu0 0.0
      %678 = vmatprep.subr.mxu0 0.0
      %679 = vmatpush1.msra.mxu0 0.0
      %680 = vmatprep.subr.mxu0 0.0
      %681 = vmatpush1.msra.mxu0 0.0
      %682 = vmatprep.subr.mxu0 0.0
      %683 = vmatpush1.msra.mxu0 0.0
      %684 = vmatprep.subr.mxu0 0.0
      %685 = vmatpush1.msra.mxu0 0.0
      %686 = vmatprep.subr.mxu0 0.0
      %687 = vmatpush1.msra.mxu0 0.0
      %688 = vmatprep.subr.mxu0 0.0
      %689 = vmatpush1.msra.mxu0 0.0
      %690 = vmatprep.subr.mxu0 0.0
      %691 = vmatpush1.msra.mxu0 0.0
      %692 = vmatprep.subr.mxu0 0.0
      %693 = vmatpush1.msra.mxu0 0.0
      %694 = vmatprep.subr.mxu0 0.0
      %695 = vmatpush1.msra.mxu0 0.0
      %696 = vmatprep.subr.mxu0 0.0
      %697 = vmatpush1.msra.mxu0 0.0
      %698 = vmatprep.subr.mxu0 0.0
      %699 = vmatpush1.msra.mxu0 0.0
      %700 = vmatprep.subr.mxu0 0.0
      %701 = vmatpush1.msra.mxu0 0.0
      %702 = vmatprep.subr.mxu0 0.0
      %703 = vmatpush1.msra.mxu0 0.0
      %704 = vmatprep.subr.mxu0 0.0
      %705 = vmatpush1.msra.mxu0 0.0
      %706 = vmatprep.subr.mxu0 0.0
      %707 = vmatpush1.msra.mxu0 0.0
      %708 = vmatprep.subr.mxu0 0.0
      %709 = vmatpush1.msra.mxu0 0.0
      %710 = vmatprep.subr.mxu0 0.0
      %711 = vmatpush1.msra.mxu0 0.0
      %712 = vmatprep.subr.mxu0 0.0
      %713 = vmatpush1.msra.mxu0 0.0
      %714 = vmatprep.subr.mxu0 0.0
      %715 = vmatpush1.msra.mxu0 0.0
      %716 = vmatprep.mubr.f32.mxu0 0.0
      %717 = vmatmul.mubr.f32.gmra.mrb[0].mxu0 %v647
      %v718 = vpop.f32.mrb[0].mxu0
      %v719 = vadd.f32 %v638, %v718
      %v720 = vpop.f32.mrb[0].mxu0
      %721 = vmatprep.mubr.f32.mxu0 0.0
      %722 = vmatmul.mubr.f32.gmra.mrb[0].mxu0 %v650
      %v723 = vpop.f32.mrb[0].mxu0
      %v724 = vadd.f32 %v643, %v723
      %v725 = vpop.f32.mrb[0].mxu0
      %726 = vdwg.mxu0
      %v727 = vld [vmem:[%s4 + $0x171] sm:$0x1]
      %v728 = vlaneseq
      %v729 = vshrl.u32 %v728, 7
      %v730 = vsub.s32 0, %v729
      %v731 = vrot.slane %v727, %v730
      %v732 = vmul.f32 %v552, %v731
      %v733 = vmul.f32 %v555, %v731
      %v734 = vadd.f32 %v719, %v732
      %v735 = vadd.f32 %v724, %v733
      %v736 = vld [vmem:[%s4 + $0x172] sm:$0x1]
      %v737 = vlaneseq
      %v738 = vshrl.u32 %v737, 7
      %v739 = vsub.s32 0, %v738
      %v740 = vrot.slane %v736, %v739
      %v741 = vadd.f32 %v734, %v740
      %v742 = vadd.f32 %v735, %v740
      %v743 = vtanh.pop %v741
      %v744 = vtanh.pop %v742
      %v745 = vsub.f32 %v741, %v743
      %v746 = vsub.f32 %v742, %v744
      %v747 = vld [vmem:[%s4 + $0x50] sm:$0xff]
      %v748 = vld [vmem:[%s4 + $0x58] sm:$0xff]
      %v749 = vld [vmem:[%s4 + $0x60] sm:$0xff]
      %v750 = vld [vmem:[%s4 + $0x68] sm:$0xff]
      %v751 = vld [vmem:[%s4 + $0x70] sm:$0xff]
      %v752 = vld [vmem:[%s4 + $0x78] sm:$0xff]
      %v753 = vld [vmem:[%s4 + $0x80] sm:$0xff]
      %v754 = vld [vmem:[%s4 + $0x88] sm:$0xff]
      %v755 = vld [vmem:[%s4 + $0x173] sm:$0x1]
      %v756 = vlaneseq
      %v757 = vshrl.u32 %v756, 7
      %v758 = vsub.s32 0, %v757
      %v759 = vrot.slane %v755, %v758
      %vm760 = vcmask 523264
      %v762 = vsel %vm760, %v745, 0
      %v765 = vsel %vm760, %v746, 0
      %767 = vmatprep.subr.mxu0 0.0
      %768 = vmatpush1.msra.mxu0 %v747
      %769 = vmatprep.subr.mxu0 0.0
      %770 = vmatpush1.msra.mxu0 %v748
      %771 = vmatprep.subr.mxu0 0.0
      %772 = vmatpush1.msra.mxu0 %v749
      %773 = vmatprep.subr.mxu0 0.0
      %774 = vmatpush1.msra.mxu0 %v750
      %775 = vmatprep.subr.mxu0 0.0
      %776 = vmatpush1.msra.mxu0 %v751
      %777 = vmatprep.subr.mxu0 0.0
      %778 = vmatpush1.msra.mxu0 %v752
      %779 = vmatprep.subr.mxu0 0.0
      %780 = vmatpush1.msra.mxu0 %v753
      %781 = vmatprep.subr.mxu0 0.0
      %782 = vmatpush1.msra.mxu0 %v754
      %783 = vmatprep.subr.mxu0 0.0
      %784 = vmatpush1.msra.mxu0 0.0
      %785 = vmatprep.subr.mxu0 0.0
      %786 = vmatpush1.msra.mxu0 0.0
      %787 = vmatprep.subr.mxu0 0.0
      %788 = vmatpush1.msra.mxu0 0.0
      %789 = vmatprep.subr.mxu0 0.0
      %790 = vmatpush1.msra.mxu0 0.0
      %791 = vmatprep.subr.mxu0 0.0
      %792 = vmatpush1.msra.mxu0 0.0
      %793 = vmatprep.subr.mxu0 0.0
      %794 = vmatpush1.msra.mxu0 0.0
      %795 = vmatprep.subr.mxu0 0.0
      %796 = vmatpush1.msra.mxu0 0.0
      %797 = vmatprep.subr.mxu0 0.0
      %798 = vmatpush1.msra.mxu0 0.0
      %799 = vmatprep.subr.mxu0 0.0
      %800 = vmatpush1.msra.mxu0 0.0
      %801 = vmatprep.subr.mxu0 0.0
      %802 = vmatpush1.msra.mxu0 0.0
      %803 = vmatprep.subr.mxu0 0.0
      %804 = vmatpush1.msra.mxu0 0.0
      %805 = vmatprep.subr.mxu0 0.0
      %806 = vmatpush1.msra.mxu0 0.0
      %807 = vmatprep.subr.mxu0 0.0
      %808 = vmatpush1.msra.mxu0 0.0
      %809 = vmatprep.subr.mxu0 0.0
      %810 = vmatpush1.msra.mxu0 0.0
      %811 = vmatprep.subr.mxu0 0.0
      %812 = vmatpush1.msra.mxu0 0.0
      %813 = vmatprep.subr.mxu0 0.0
      %814 = vmatpush1.msra.mxu0 0.0
      %815 = vmatprep.subr.mxu0 0.0
      %816 = vmatpush1.msra.mxu0 0.0
      %817 = vmatprep.subr.mxu0 0.0
      %818 = vmatpush1.msra.mxu0 0.0
      %819 = vmatprep.subr.mxu0 0.0
      %820 = vmatpush1.msra.mxu0 0.0
      %821 = vmatprep.subr.mxu0 0.0
      %822 = vmatpush1.msra.mxu0 0.0
      %823 = vmatprep.subr.mxu0 0.0
      %824 = vmatpush1.msra.mxu0 0.0
      %825 = vmatprep.subr.mxu0 0.0
      %826 = vmatpush1.msra.mxu0 0.0
      %827 = vmatprep.subr.mxu0 0.0
      %828 = vmatpush1.msra.mxu0 0.0
      %829 = vmatprep.subr.mxu0 0.0
      %830 = vmatpush1.msra.mxu0 0.0
      %831 = vmatprep.mubr.f32.mxu0 0.0
      %832 = vmatmul.mubr.f32.gmra.mrb[0].mxu0 %v762
      %v833 = vpop.f32.mrb[0].mxu0
      %v834 = vadd.f32 %v759, %v833
      %v835 = vpop.f32.mrb[0].mxu0
      %836 = vmatprep.mubr.f32.mxu0 0.0
      %837 = vmatmul.mubr.f32.gmra.mrb[0].mxu0 %v765
      %v838 = vpop.f32.mrb[0].mxu0
      %v839 = vadd.f32 %v759, %v838
      %v840 = vpop.f32.mrb[0].mxu0
      %841 = vdwg.mxu0
      %v842 = vtanh.pop %v834
      %v843 = vtanh.pop %v839
      %v844 = vsub.f32 %v834, %v842
      %v845 = vsub.f32 %v839, %v843
      %v846 = vxor.u32 %v834, 2147483648
      %v847 = vxor.u32 %v839, 2147483648
      %v848 = vmul.f32 %v846, 1.442695
      %v849 = vpow.pop %v848
      %v850 = vmul.f32 %v847, 1.442695
      %v851 = vpow.pop %v850
      %v852 = vadd.f32 %v849, 1.0
      %v853 = vadd.f32 %v851, 1.0
      %v854 = vrcp.pop %v852
      %v855 = vmul.f32 1.0, %v854
      %v856 = vrcp.pop %v853
      %v857 = vmul.f32 1.0, %v856
      %859 = vset.pattern.permute.xlu0 32
      %860 = vperm.xlu0 %859, %v855
      %v861 = vpop.permute.xlu0 %860
      %864 = vset.pattern.permute.xlu0 32
      %865 = vperm.xlu0 %864, %v857
      %v866 = vpop.permute.xlu0 %865
      %v868 = vmul.f32 %v844, %v861
      %v869 = vmul.f32 %v845, %v866
      %v871 = vsel %vm286, %v278, 0
      %873 = vmatprep.subr.mxu0 0.0
      %874 = vmatpush1.msra.mxu0 %v868
      %875 = vmatprep.subr.mxu0 0.0
      %876 = vmatpush1.msra.mxu0 %v869
      %877 = vmatprep.subr.mxu0 0.0
      %878 = vmatpush1.msra.mxu0 0.0
      %879 = vmatprep.subr.mxu0 0.0
      %880 = vmatpush1.msra.mxu0 0.0
      %881 = vmatprep.subr.mxu0 0.0
      %882 = vmatpush1.msra.mxu0 0.0
      %883 = vmatprep.subr.mxu0 0.0
      %884 = vmatpush1.msra.mxu0 0.0
      %885 = vmatprep.subr.mxu0 0.0
      %886 = vmatpush1.msra.mxu0 0.0
      %887 = vmatprep.subr.mxu0 0.0
      %888 = vmatpush1.msra.mxu0 0.0
      %889 = vmatprep.subr.mxu0 0.0
      %890 = vmatpush1.msra.mxu0 0.0
      %891 = vmatprep.subr.mxu0 0.0
      %892 = vmatpush1.msra.mxu0 0.0
      %893 = vmatprep.subr.mxu0 0.0
      %894 = vmatpush1.msra.mxu0 0.0
      %895 = vmatprep.subr.mxu0 0.0
      %896 = vmatpush1.msra.mxu0 0.0
      %897 = vmatprep.subr.mxu0 0.0
      %898 = vmatpush1.msra.mxu0 0.0
      %899 = vmatprep.subr.mxu0 0.0
      %900 = vmatpush1.msra.mxu0 0.0
      %901 = vmatprep.subr.mxu0 0.0
      %902 = vmatpush1.msra.mxu0 0.0
      %903 = vmatprep.subr.mxu0 0.0
      %904 = vmatpush1.msra.mxu0 0.0
      %905 = vmatprep.subr.mxu0 0.0
      %906 = vmatpush1.msra.mxu0 0.0
      %907 = vmatprep.subr.mxu0 0.0
      %908 = vmatpush1.msra.mxu0 0.0
      %909 = vmatprep.subr.mxu0 0.0
      %910 = vmatpush1.msra.mxu0 0.0
      %911 = vmatprep.subr.mxu0 0.0
      %912 = vmatpush1.msra.mxu0 0.0
      %913 = vmatprep.subr.mxu0 0.0
      %914 = vmatpush1.msra.mxu0 0.0
      %915 = vmatprep.subr.mxu0 0.0
      %916 = vmatpush1.msra.mxu0 0.0
      %917 = vmatprep.subr.mxu0 0.0
      %918 = vmatpush1.msra.mxu0 0.0
      %919 = vmatprep.subr.mxu0 0.0
      %920 = vmatpush1.msra.mxu0 0.0
      %921 = vmatprep.subr.mxu0 0.0
      %922 = vmatpush1.msra.mxu0 0.0
      %923 = vmatprep.subr.mxu0 0.0
      %924 = vmatpush1.msra.mxu0 0.0
      %925 = vmatprep.subr.mxu0 0.0
      %926 = vmatpush1.msra.mxu0 0.0
      %927 = vmatprep.subr.mxu0 0.0
      %928 = vmatpush1.msra.mxu0 0.0
      %929 = vmatprep.subr.mxu0 0.0
      %930 = vmatpush1.msra.mxu0 0.0
      %931 = vmatprep.subr.mxu0 0.0
      %932 = vmatpush1.msra.mxu0 0.0
      %933 = vmatprep.subr.mxu0 0.0
      %934 = vmatpush1.msra.mxu0 0.0
      %935 = vmatprep.subr.mxu0 0.0
      %936 = vmatpush1.msra.mxu0 0.0
      %937 = vmatprep.mubr.f32.mxu0 0.0
      %938 = vmatmul.mubr.f32.gmra.mrb[0].mxu0 %v871
      %v939 = vpop.f32.mrb[0].mxu0
      %v940 = vadd.f32 0.0, %v939
      %v941 = vpop.f32.mrb[0].mxu0
      %942 = vdwg.mxu0
      %944 = vrot.lane.b32.xlu0 %v940, 32
      %v945 = vpop.permute.xlu0 %944
      %v947 = vsel %vm564, %v361, %v945
      %v948 = vld [vmem:[%s4 + $0x90] sm:$0xff]
      %v949 = vld [vmem:[%s4 + $0x98] sm:$0xff]
      %v950 = vld [vmem:[%s4 + $0xa0] sm:$0xff]
      %v951 = vld [vmem:[%s4 + $0xa8] sm:$0xff]
      %v952 = vld [vmem:[%s4 + $0xb0] sm:$0xff]
      %v953 = vld [vmem:[%s4 + $0xb8] sm:$0xff]
      %v954 = vld [vmem:[%s4 + $0xc0] sm:$0xff]
      %v955 = vld [vmem:[%s4 + $0xc8] sm:$0xff]
      %v956 = vld [vmem:[%s4 + $0x174] sm:$0x1]
      %v957 = vlaneseq
      %v958 = vshrl.u32 %v957, 7
      %v959 = vsub.s32 0, %v958
      %v960 = vrot.slane %v956, %v959
      %v962 = vsel %vm760, %v947, 0
      %964 = vmatprep.subr.mxu0 0.0
      %965 = vmatpush1.msra.mxu0 %v948
      %966 = vmatprep.subr.mxu0 0.0
      %967 = vmatpush1.msra.mxu0 %v949
      %968 = vmatprep.subr.mxu0 0.0
      %969 = vmatpush1.msra.mxu0 %v950
      %970 = vmatprep.subr.mxu0 0.0
      %971 = vmatpush1.msra.mxu0 %v951
      %972 = vmatprep.subr.mxu0 0.0
      %973 = vmatpush1.msra.mxu0 %v952
      %974 = vmatprep.subr.mxu0 0.0
      %975 = vmatpush1.msra.mxu0 %v953
      %976 = vmatprep.subr.mxu0 0.0
      %977 = vmatpush1.msra.mxu0 %v954
      %978 = vmatprep.subr.mxu0 0.0
      %979 = vmatpush1.msra.mxu0 %v955
      %980 = vmatprep.subr.mxu0 0.0
      %981 = vmatpush1.msra.mxu0 0.0
      %982 = vmatprep.subr.mxu0 0.0
      %983 = vmatpush1.msra.mxu0 0.0
      %984 = vmatprep.subr.mxu0 0.0
      %985 = vmatpush1.msra.mxu0 0.0
      %986 = vmatprep.subr.mxu0 0.0
      %987 = vmatpush1.msra.mxu0 0.0
      %988 = vmatprep.subr.mxu0 0.0
      %989 = vmatpush1.msra.mxu0 0.0
      %990 = vmatprep.subr.mxu0 0.0
      %991 = vmatpush1.msra.mxu0 0.0
      %992 = vmatprep.subr.mxu0 0.0
      %993 = vmatpush1.msra.mxu0 0.0
      %994 = vmatprep.subr.mxu0 0.0
      %995 = vmatpush1.msra.mxu0 0.0
      %996 = vmatprep.subr.mxu0 0.0
      %997 = vmatpush1.msra.mxu0 0.0
      %998 = vmatprep.subr.mxu0 0.0
      %999 = vmatpush1.msra.mxu0 0.0
      %1000 = vmatprep.subr.mxu0 0.0
      %1001 = vmatpush1.msra.mxu0 0.0
      %1002 = vmatprep.subr.mxu0 0.0
      %1003 = vmatpush1.msra.mxu0 0.0
      %1004 = vmatprep.subr.mxu0 0.0
      %1005 = vmatpush1.msra.mxu0 0.0
      %1006 = vmatprep.subr.mxu0 0.0
      %1007 = vmatpush1.msra.mxu0 0.0
      %1008 = vmatprep.subr.mxu0 0.0
      %1009 = vmatpush1.msra.mxu0 0.0
      %1010 = vmatprep.subr.mxu0 0.0
      %1011 = vmatpush1.msra.mxu0 0.0
      %1012 = vmatprep.subr.mxu0 0.0
      %1013 = vmatpush1.msra.mxu0 0.0
      %1014 = vmatprep.subr.mxu0 0.0
      %1015 = vmatpush1.msra.mxu0 0.0
      %1016 = vmatprep.subr.mxu0 0.0
      %1017 = vmatpush1.msra.mxu0 0.0
      %1018 = vmatprep.subr.mxu0 0.0
      %1019 = vmatpush1.msra.mxu0 0.0
      %1020 = vmatprep.subr.mxu0 0.0
      %1021 = vmatpush1.msra.mxu0 0.0
      %1022 = vmatprep.subr.mxu0 0.0
      %1023 = vmatpush1.msra.mxu0 0.0
      %1024 = vmatprep.subr.mxu0 0.0
      %1025 = vmatpush1.msra.mxu0 0.0
      %1026 = vmatprep.subr.mxu0 0.0
      %1027 = vmatpush1.msra.mxu0 0.0
      %1028 = vmatprep.mubr.f32.mxu0 0.0
      %1029 = vmatmul.mubr.f32.gmra.mrb[0].mxu0 %v962
      %v1030 = vpop.f32.mrb[0].mxu0
      %v1031 = vadd.f32 %v960, %v1030
      %v1032 = vpop.f32.mrb[0].mxu0
      %1033 = vdwg.mxu0
      %v1034 = vtanh.pop %v1031
      %v1035 = vsub.f32 %v1031, %v1034
      %v1036 = vld [vmem:[%s4 + $0xd0] sm:$0xff]
      %v1037 = vld [vmem:[%s4 + $0xd8] sm:$0xff]
      %v1038 = vld [vmem:[%s4 + $0xe0] sm:$0xff]
      %v1039 = vld [vmem:[%s4 + $0xe8] sm:$0xff]
      %v1040 = vld [vmem:[%s4 + $0x175] sm:$0x1]
      %v1041 = vlaneseq
      %v1042 = vshrl.u32 %v1041, 7
      %v1043 = vsub.s32 0, %v1042
      %v1044 = vrot.slane %v1040, %v1043
      %v1046 = vsel %vm564, %v1035, 0
      %1048 = vmatprep.subr.mxu0 0.0
      %1049 = vmatpush1.msra.mxu0 %v1036
      %1050 = vmatprep.subr.mxu0 0.0
      %1051 = vmatpush1.msra.mxu0 %v1037
      %1052 = vmatprep.subr.mxu0 0.0
      %1053 = vmatpush1.msra.mxu0 %v1038
      %1054 = vmatprep.subr.mxu0 0.0
      %1055 = vmatpush1.msra.mxu0 %v1039
      %1056 = vmatprep.subr.mxu0 0.0
      %1057 = vmatpush1.msra.mxu0 0.0
      %1058 = vmatprep.subr.mxu0 0.0
      %1059 = vmatpush1.msra.mxu0 0.0
      %1060 = vmatprep.subr.mxu0 0.0
      %1061 = vmatpush1.msra.mxu0 0.0
      %1062 = vmatprep.subr.mxu0 0.0
      %1063 = vmatpush1.msra.mxu0 0.0
      %1064 = vmatprep.subr.mxu0 0.0
      %1065 = vmatpush1.msra.mxu0 0.0
      %1066 = vmatprep.subr.mxu0 0.0
      %1067 = vmatpush1.msra.mxu0 0.0
      %1068 = vmatprep.subr.mxu0 0.0
      %1069 = vmatpush1.msra.mxu0 0.0
      %1070 = vmatprep.subr.mxu0 0.0
      %1071 = vmatpush1.msra.mxu0 0.0
      %1072 = vmatprep.subr.mxu0 0.0
      %1073 = vmatpush1.msra.mxu0 0.0
      %1074 = vmatprep.subr.mxu0 0.0
      %1075 = vmatpush1.msra.mxu0 0.0
      %1076 = vmatprep.subr.mxu0 0.0
      %1077 = vmatpush1.msra.mxu0 0.0
      %1078 = vmatprep.subr.mxu0 0.0
      %1079 = vmatpush1.msra.mxu0 0.0
      %1080 = vmatprep.subr.mxu0 0.0
      %1081 = vmatpush1.msra.mxu0 0.0
      %1082 = vmatprep.subr.mxu0 0.0
      %1083 = vmatpush1.msra.mxu0 0.0
      %1084 = vmatprep.subr.mxu0 0.0
      %1085 = vmatpush1.msra.mxu0 0.0
      %1086 = vmatprep.subr.mxu0 0.0
      %1087 = vmatpush1.msra.mxu0 0.0
      %1088 = vmatprep.subr.mxu0 0.0
      %1089 = vmatpush1.msra.mxu0 0.0
      %1090 = vmatprep.subr.mxu0 0.0
      %1091 = vmatpush1.msra.mxu0 0.0
      %1092 = vmatprep.subr.mxu0 0.0
      %1093 = vmatpush1.msra.mxu0 0.0
      %1094 = vmatprep.subr.mxu0 0.0
      %1095 = vmatpush1.msra.mxu0 0.0
      %1096 = vmatprep.subr.mxu0 0.0
      %1097 = vmatpush1.msra.mxu0 0.0
      %1098 = vmatprep.subr.mxu0 0.0
      %1099 = vmatpush1.msra.mxu0 0.0
      %1100 = vmatprep.subr.mxu0 0.0
      %1101 = vmatpush1.msra.mxu0 0.0
      %1102 = vmatprep.subr.mxu0 0.0
      %1103 = vmatpush1.msra.mxu0 0.0
      %1104 = vmatprep.subr.mxu0 0.0
      %1105 = vmatpush1.msra.mxu0 0.0
      %1106 = vmatprep.subr.mxu0 0.0
      %1107 = vmatpush1.msra.mxu0 0.0
      %1108 = vmatprep.subr.mxu0 0.0
      %1109 = vmatpush1.msra.mxu0 0.0
      %1110 = vmatprep.subr.mxu0 0.0
      %1111 = vmatpush1.msra.mxu0 0.0
      %1112 = vmatprep.mubr.f32.mxu0 0.0
      %1113 = vmatmul.mubr.f32.gmra.mrb[0].mxu0 %v1046
      %v1114 = vpop.f32.mrb[0].mxu0
      %v1115 = vadd.f32 %v1044, %v1114
      %v1116 = vpop.f32.mrb[0].mxu0
      %1117 = vdwg.mxu0
      %v1118 = vadd.f32 %v361, %v1115
      %v1119 = vld [vmem:[%s4 + $0xf0] sm:$0xff]
      %v1120 = vld [vmem:[%s4 + $0xf8] sm:$0xff]
      %v1121 = vld [vmem:[%s4 + $0x100] sm:$0xff]
      %v1122 = vld [vmem:[%s4 + $0x108] sm:$0xff]
      %v1123 = vld [vmem:[%s4 + $0x176] sm:$0x1]
      %v1124 = vlaneseq
      %v1125 = vshrl.u32 %v1124, 7
      %v1126 = vsub.s32 0, %v1125
      %v1127 = vrot.slane %v1123, %v1126
      %v1129 = vsel %vm564, %v1118, 0
      %1131 = vmatprep.subr.mxu0 0.0
      %1132 = vmatpush1.msra.mxu0 %v1119
      %1133 = vmatprep.subr.mxu0 0.0
      %1134 = vmatpush1.msra.mxu0 %v1120
      %1135 = vmatprep.subr.mxu0 0.0
      %1136 = vmatpush1.msra.mxu0 %v1121
      %1137 = vmatprep.subr.mxu0 0.0
      %1138 = vmatpush1.msra.mxu0 %v1122
      %1139 = vmatprep.subr.mxu0 0.0
      %1140 = vmatpush1.msra.mxu0 0.0
      %1141 = vmatprep.subr.mxu0 0.0
      %1142 = vmatpush1.msra.mxu0 0.0
      %1143 = vmatprep.subr.mxu0 0.0
      %1144 = vmatpush1.msra.mxu0 0.0
      %1145 = vmatprep.subr.mxu0 0.0
      %1146 = vmatpush1.msra.mxu0 0.0
      %1147 = vmatprep.subr.mxu0 0.0
      %1148 = vmatpush1.msra.mxu0 0.0
      %1149 = vmatprep.subr.mxu0 0.0
      %1150 = vmatpush1.msra.mxu0 0.0
      %1151 = vmatprep.subr.mxu0 0.0
      %1152 = vmatpush1.msra.mxu0 0.0
      %1153 = vmatprep.subr.mxu0 0.0
      %1154 = vmatpush1.msra.mxu0 0.0
      %1155 = vmatprep.subr.mxu0 0.0
      %1156 = vmatpush1.msra.mxu0 0.0
      %1157 = vmatprep.subr.mxu0 0.0
      %1158 = vmatpush1.msra.mxu0 0.0
      %1159 = vmatprep.subr.mxu0 0.0
      %1160 = vmatpush1.msra.mxu0 0.0
      %1161 = vmatprep.subr.mxu0 0.0
      %1162 = vmatpush1.msra.mxu0 0.0
      %1163 = vmatprep.subr.mxu0 0.0
      %1164 = vmatpush1.msra.mxu0 0.0
      %1165 = vmatprep.subr.mxu0 0.0
      %1166 = vmatpush1.msra.mxu0 0.0
      %1167 = vmatprep.subr.mxu0 0.0
      %1168 = vmatpush1.msra.mxu0 0.0
      %1169 = vmatprep.subr.mxu0 0.0
      %1170 = vmatpush1.msra.mxu0 0.0
      %1171 = vmatprep.subr.mxu0 0.0
      %1172 = vmatpush1.msra.mxu0 0.0
      %1173 = vmatprep.subr.mxu0 0.0
      %1174 = vmatpush1.msra.mxu0 0.0
      %1175 = vmatprep.subr.mxu0 0.0
      %1176 = vmatpush1.msra.mxu0 0.0
      %1177 = vmatprep.subr.mxu0 0.0
      %1178 = vmatpush1.msra.mxu0 0.0
      %1179 = vmatprep.subr.mxu0 0.0
      %1180 = vmatpush1.msra.mxu0 0.0
      %1181 = vmatprep.subr.mxu0 0.0
      %1182 = vmatpush1.msra.mxu0 0.0
      %1183 = vmatprep.subr.mxu0 0.0
      %1184 = vmatpush1.msra.mxu0 0.0
      %1185 = vmatprep.subr.mxu0 0.0
      %1186 = vmatpush1.msra.mxu0 0.0
      %1187 = vmatprep.subr.mxu0 0.0
      %1188 = vmatpush1.msra.mxu0 0.0
      %1189 = vmatprep.subr.mxu0 0.0
      %1190 = vmatpush1.msra.mxu0 0.0
      %1191 = vmatprep.subr.mxu0 0.0
      %1192 = vmatpush1.msra.mxu0 0.0
      %1193 = vmatprep.subr.mxu0 0.0
      %1194 = vmatpush1.msra.mxu0 0.0
      %1195 = vmatprep.mubr.f32.mxu0 0.0
      %1196 = vmatmul.mubr.f32.gmra.mrb[0].mxu0 %v1129
      %v1197 = vpop.f32.mrb[0].mxu0
      %v1198 = vadd.f32 %v1127, %v1197
      %v1199 = vpop.f32.mrb[0].mxu0
      %1200 = vdwg.mxu0
      %v1201 = vtanh.pop %v1198
      %v1202 = vsub.f32 %v1198, %v1201
      %v1203 = vsel %vm564, %v1202, 0.0
      %v1204 = vrot.slane %v1203, 4
      %v1205 = vadd.f32 %v1203, %v1204
      %v1206 = vrot.slane %v1205, 2
      %v1207 = vadd.f32 %v1205, %v1206
      %v1208 = vrot.slane %v1207, 1
      %v1209 = vadd.f32 %v1207, %v1208
      %v1210 = vld [vmem:[%s4 + $0x110] sm:$0xff]
      %v1211 = vld [vmem:[%s4 + $0x118] sm:$0xff]
      %v1212 = vld [vmem:[%s4 + $0x120] sm:$0xff]
      %v1213 = vld [vmem:[%s4 + $0x128] sm:$0xff]
      %v1214 = vld [vmem:[%s4 + $0x177] sm:$0x1]
      %v1216 = vsel %vm564, %v1209, 0
      %1218 = vmatprep.subr.mxu0 0.0
      %1219 = vmatpush1.msra.mxu0 %v1210
      %1220 = vmatprep.subr.mxu0 0.0
      %1221 = vmatpush1.msra.mxu0 %v1211
      %1222 = vmatprep.subr.mxu0 0.0
      %1223 = vmatpush1.msra.mxu0 %v1212
      %1224 = vmatprep.subr.mxu0 0.0
      %1225 = vmatpush1.msra.mxu0 %v1213
      %1226 = vmatprep.subr.mxu0 0.0
      %1227 = vmatpush1.msra.mxu0 0.0
      %1228 = vmatprep.subr.mxu0 0.0
      %1229 = vmatpush1.msra.mxu0 0.0
      %1230 = vmatprep.subr.mxu0 0.0
      %1231 = vmatpush1.msra.mxu0 0.0
      %1232 = vmatprep.subr.mxu0 0.0
      %1233 = vmatpush1.msra.mxu0 0.0
      %1234 = vmatprep.subr.mxu0 0.0
      %1235 = vmatpush1.msra.mxu0 0.0
      %1236 = vmatprep.subr.mxu0 0.0
      %1237 = vmatpush1.msra.mxu0 0.0
      %1238 = vmatprep.subr.mxu0 0.0
      %1239 = vmatpush1.msra.mxu0 0.0
      %1240 = vmatprep.subr.mxu0 0.0
      %1241 = vmatpush1.msra.mxu0 0.0
      %1242 = vmatprep.subr.mxu0 0.0
      %1243 = vmatpush1.msra.mxu0 0.0
      %1244 = vmatprep.subr.mxu0 0.0
      %1245 = vmatpush1.msra.mxu0 0.0
      %1246 = vmatprep.subr.mxu0 0.0
      %1247 = vmatpush1.msra.mxu0 0.0
      %1248 = vmatprep.subr.mxu0 0.0
      %1249 = vmatpush1.msra.mxu0 0.0
      %1250 = vmatprep.subr.mxu0 0.0
      %1251 = vmatpush1.msra.mxu0 0.0
      %1252 = vmatprep.subr.mxu0 0.0
      %1253 = vmatpush1.msra.mxu0 0.0
      %1254 = vmatprep.subr.mxu0 0.0
      %1255 = vmatpush1.msra.mxu0 0.0
      %1256 = vmatprep.subr.mxu0 0.0
      %1257 = vmatpush1.msra.mxu0 0.0
      %1258 = vmatprep.subr.mxu0 0.0
      %1259 = vmatpush1.msra.mxu0 0.0
      %1260 = vmatprep.subr.mxu0 0.0
      %1261 = vmatpush1.msra.mxu0 0.0
      %1262 = vmatprep.subr.mxu0 0.0
      %1263 = vmatpush1.msra.mxu0 0.0
      %1264 = vmatprep.subr.mxu0 0.0
      %1265 = vmatpush1.msra.mxu0 0.0
      %1266 = vmatprep.subr.mxu0 0.0
      %1267 = vmatpush1.msra.mxu0 0.0
      %1268 = vmatprep.subr.mxu0 0.0
      %1269 = vmatpush1.msra.mxu0 0.0
      %1270 = vmatprep.subr.mxu0 0.0
      %1271 = vmatpush1.msra.mxu0 0.0
      %1272 = vmatprep.subr.mxu0 0.0
      %1273 = vmatpush1.msra.mxu0 0.0
      %1274 = vmatprep.subr.mxu0 0.0
      %1275 = vmatpush1.msra.mxu0 0.0
      %1276 = vmatprep.subr.mxu0 0.0
      %1277 = vmatpush1.msra.mxu0 0.0
      %1278 = vmatprep.subr.mxu0 0.0
      %1279 = vmatpush1.msra.mxu0 0.0
      %1280 = vmatprep.subr.mxu0 0.0
      %1281 = vmatpush1.msra.mxu0 0.0
      %1282 = vmatprep.mubr.f32.mxu0 0.0
      %1283 = vmatmul.mubr.f32.gmra.mrb[0].mxu0 %v1216
      %v1284 = vpop.f32.mrb[0].mxu0
      %v1285 = vadd.f32 %v1214, %v1284
      %v1286 = vpop.f32.mrb[0].mxu0
      %1287 = vdwg.mxu0
      %v1288 = vld [vmem:[%s4 + $0x130] sm:$0xff]
      %v1289 = vld [vmem:[%s4 + $0x138] sm:$0xff]
      %v1290 = vld [vmem:[%s4 + $0x140] sm:$0xff]
      %v1291 = vld [vmem:[%s4 + $0x148] sm:$0xff]
      %v1292 = vld [vmem:[%s4 + $0x178] sm:$0x1]
      %v1294 = vsel %vm564, %v1285, 0
      %1296 = vmatprep.subr.mxu0 0.0
      %1297 = vmatpush1.msra.mxu0 %v1288
      %1298 = vmatprep.subr.mxu0 0.0
      %1299 = vmatpush1.msra.mxu0 %v1289
      %1300 = vmatprep.subr.mxu0 0.0
      %1301 = vmatpush1.msra.mxu0 %v1290
      %1302 = vmatprep.subr.mxu0 0.0
      %1303 = vmatpush1.msra.mxu0 %v1291
      %1304 = vmatprep.subr.mxu0 0.0
      %1305 = vmatpush1.msra.mxu0 0.0
      %1306 = vmatprep.subr.mxu0 0.0
      %1307 = vmatpush1.msra.mxu0 0.0
      %1308 = vmatprep.subr.mxu0 0.0
      %1309 = vmatpush1.msra.mxu0 0.0
      %1310 = vmatprep.subr.mxu0 0.0
      %1311 = vmatpush1.msra.mxu0 0.0
      %1312 = vmatprep.subr.mxu0 0.0
      %1313 = vmatpush1.msra.mxu0 0.0
      %1314 = vmatprep.subr.mxu0 0.0
      %1315 = vmatpush1.msra.mxu0 0.0
      %1316 = vmatprep.subr.mxu0 0.0
      %1317 = vmatpush1.msra.mxu0 0.0
      %1318 = vmatprep.subr.mxu0 0.0
      %1319 = vmatpush1.msra.mxu0 0.0
      %1320 = vmatprep.subr.mxu0 0.0
      %1321 = vmatpush1.msra.mxu0 0.0
      %1322 = vmatprep.subr.mxu0 0.0
      %1323 = vmatpush1.msra.mxu0 0.0
      %1324 = vmatprep.subr.mxu0 0.0
      %1325 = vmatpush1.msra.mxu0 0.0
      %1326 = vmatprep.subr.mxu0 0.0
      %1327 = vmatpush1.msra.mxu0 0.0
      %1328 = vmatprep.subr.mxu0 0.0
      %1329 = vmatpush1.msra.mxu0 0.0
      %1330 = vmatprep.subr.mxu0 0.0
      %1331 = vmatpush1.msra.mxu0 0.0
      %1332 = vmatprep.subr.mxu0 0.0
      %1333 = vmatpush1.msra.mxu0 0.0
      %1334 = vmatprep.subr.mxu0 0.0
      %1335 = vmatpush1.msra.mxu0 0.0
      %1336 = vmatprep.subr.mxu0 0.0
      %1337 = vmatpush1.msra.mxu0 0.0
      %1338 = vmatprep.subr.mxu0 0.0
      %1339 = vmatpush1.msra.mxu0 0.0
      %1340 = vmatprep.subr.mxu0 0.0
      %1341 = vmatpush1.msra.mxu0 0.0
      %1342 = vmatprep.subr.mxu0 0.0
      %1343 = vmatpush1.msra.mxu0 0.0
      %1344 = vmatprep.subr.mxu0 0.0
      %1345 = vmatpush1.msra.mxu0 0.0
      %1346 = vmatprep.subr.mxu0 0.0
      %1347 = vmatpush1.msra.mxu0 0.0
      %1348 = vmatprep.subr.mxu0 0.0
      %1349 = vmatpush1.msra.mxu0 0.0
      %1350 = vmatprep.subr.mxu0 0.0
      %1351 = vmatpush1.msra.mxu0 0.0
      %1352 = vmatprep.subr.mxu0 0.0
      %1353 = vmatpush1.msra.mxu0 0.0
      %1354 = vmatprep.subr.mxu0 0.0
      %1355 = vmatpush1.msra.mxu0 0.0
      %1356 = vmatprep.subr.mxu0 0.0
      %1357 = vmatpush1.msra.mxu0 0.0
      %1358 = vmatprep.subr.mxu0 0.0
      %1359 = vmatpush1.msra.mxu0 0.0
      %1360 = vmatprep.mubr.f32.mxu0 0.0
      %1361 = vmatmul.mubr.f32.gmra.mrb[0].mxu0 %v1294
      %v1362 = vpop.f32.mrb[0].mxu0
      %v1363 = vadd.f32 %v1292, %v1362
      %v1364 = vpop.f32.mrb[0].mxu0
      %1365 = vdwg.mxu0
      %v1366 = vtanh.pop %v1363
      %v1367 = vsub.f32 %v1363, %v1366
      %v1368 = vld [vmem:[%s4 + $0x150] sm:$0xff]
      %v1369 = vld [vmem:[%s4 + $0x158] sm:$0xff]
      %v1370 = vld [vmem:[%s4 + $0x160] sm:$0xff]
      %v1371 = vld [vmem:[%s4 + $0x168] sm:$0xff]
      %v1372 = vld [vmem:[%s4 + $0x179] sm:$0x1]
      %v1374 = vsel %vm564, %v1367, 0
      %1376 = vmatprep.subr.mxu0 0.0
      %1377 = vmatpush1.msra.mxu0 %v1368
      %1378 = vmatprep.subr.mxu0 0.0
      %1379 = vmatpush1.msra.mxu0 %v1369
      %1380 = vmatprep.subr.mxu0 0.0
      %1381 = vmatpush1.msra.mxu0 %v1370
      %1382 = vmatprep.subr.mxu0 0.0
      %1383 = vmatpush1.msra.mxu0 %v1371
      %1384 = vmatprep.subr.mxu0 0.0
      %1385 = vmatpush1.msra.mxu0 0.0
      %1386 = vmatprep.subr.mxu0 0.0
      %1387 = vmatpush1.msra.mxu0 0.0
      %1388 = vmatprep.subr.mxu0 0.0
      %1389 = vmatpush1.msra.mxu0 0.0
      %1390 = vmatprep.subr.mxu0 0.0
      %1391 = vmatpush1.msra.mxu0 0.0
      %1392 = vmatprep.subr.mxu0 0.0
      %1393 = vmatpush1.msra.mxu0 0.0
      %1394 = vmatprep.subr.mxu0 0.0
      %1395 = vmatpush1.msra.mxu0 0.0
      %1396 = vmatprep.subr.mxu0 0.0
      %1397 = vmatpush1.msra.mxu0 0.0
      %1398 = vmatprep.subr.mxu0 0.0
      %1399 = vmatpush1.msra.mxu0 0.0
      %1400 = vmatprep.subr.mxu0 0.0
      %1401 = vmatpush1.msra.mxu0 0.0
      %1402 = vmatprep.subr.mxu0 0.0
      %1403 = vmatpush1.msra.mxu0 0.0
      %1404 = vmatprep.subr.mxu0 0.0
      %1405 = vmatpush1.msra.mxu0 0.0
      %1406 = vmatprep.subr.mxu0 0.0
      %1407 = vmatpush1.msra.mxu0 0.0
      %1408 = vmatprep.subr.mxu0 0.0
      %1409 = vmatpush1.msra.mxu0 0.0
      %1410 = vmatprep.subr.mxu0 0.0
      %1411 = vmatpush1.msra.mxu0 0.0
      %1412 = vmatprep.subr.mxu0 0.0
      %1413 = vmatpush1.msra.mxu0 0.0
      %1414 = vmatprep.subr.mxu0 0.0
      %1415 = vmatpush1.msra.mxu0 0.0
      %1416 = vmatprep.subr.mxu0 0.0
      %1417 = vmatpush1.msra.mxu0 0.0
      %1418 = vmatprep.subr.mxu0 0.0
      %1419 = vmatpush1.msra.mxu0 0.0
      %1420 = vmatprep.subr.mxu0 0.0
      %1421 = vmatpush1.msra.mxu0 0.0
      %1422 = vmatprep.subr.mxu0 0.0
      %1423 = vmatpush1.msra.mxu0 0.0
      %1424 = vmatprep.subr.mxu0 0.0
      %1425 = vmatpush1.msra.mxu0 0.0
      %1426 = vmatprep.subr.mxu0 0.0
      %1427 = vmatpush1.msra.mxu0 0.0
      %1428 = vmatprep.subr.mxu0 0.0
      %1429 = vmatpush1.msra.mxu0 0.0
      %1430 = vmatprep.subr.mxu0 0.0
      %1431 = vmatpush1.msra.mxu0 0.0
      %1432 = vmatprep.subr.mxu0 0.0
      %1433 = vmatpush1.msra.mxu0 0.0
      %1434 = vmatprep.subr.mxu0 0.0
      %1435 = vmatpush1.msra.mxu0 0.0
      %1436 = vmatprep.subr.mxu0 0.0
      %1437 = vmatpush1.msra.mxu0 0.0
      %1438 = vmatprep.subr.mxu0 0.0
      %1439 = vmatpush1.msra.mxu0 0.0
      %1440 = vmatprep.mubr.f32.mxu0 0.0
      %1441 = vmatmul.mubr.f32.gmra.mrb[0].mxu0 %v1374
      %v1442 = vpop.f32.mrb[0].mxu0
      %v1443 = vadd.f32 %v1372, %v1442
      %v1444 = vpop.f32.mrb[0].mxu0
      %1445 = vdwg.mxu0
      %vm1446 = vcmask 0
      %1447 = vst.msk [vmem:[%s271] sm:$0x1] %vm1446, %v1443
      %p1448 = scmp.lt.s32.totalorder %s16, 3
      %s1449 = scalar_select %p1448, %s16, 3
      %s1450 = scalar_lea.vmem %s5, %s1449
      // Predicated region
      $region41: #{tpu_custom_call.1} parent=39 // pred_check
        %p1451 = pneg %p159
      $region42: #{tpu_custom_call.1} parent=39 // pred_check_branch
        %1453 = sbr.rel (%p1451) target = $region44
      $region43: #{tpu_custom_call.1} parent=39 // pred_region
        _
      $region44: #{tpu_custom_call.1} parent=39 // pred_fallthru
        _
    $region40: #{tpu_custom_call.1} parent=5 // pred_fallthru
      _
    %p1454 = scmp.le.s32.totalorder 2, %s11
    // Predicated region
    $region45: #{tpu_custom_call.1} parent=5 // pred_check
      %p1455 = pneg %p1454
    $region46: #{tpu_custom_call.1} parent=5 // pred_check_branch
      %1457 = sbr.rel (%p1455) target = $region48
    $region47: #{tpu_custom_call.1} parent=5 // pred_region
      %s1458 = ssub.s32 %s11, 2
      // Predicated region
      $region49: #{tpu_custom_call.1} parent=47 // pred_check
        %p1459 = pneg %p165
      $region50: #{tpu_custom_call.1} parent=47 // pred_check_branch
        %1461 = sbr.rel (%p1459) target = $region52
      $region51: #{tpu_custom_call.1} parent=47 // pred_region
        %p1462 = scmp.lt.s32.totalorder %s17, 3
        %s1463 = scalar_select %p1462, %s17, 3
        %s1464 = scalar_lea.vmem %s5, %s1463
      $region52: #{tpu_custom_call.1} parent=47 // pred_fallthru
        _
    $region48: #{tpu_custom_call.1} parent=5 // pred_fallthru
      _
  $region6: #{tpu_custom_call.1} parent=0 // loop_footer
    %s15 = sadd.s32 1, %s11
  $region7: #{tpu_custom_call.1} parent=0 // loop_footer_branch
    %10 = sbr.rel target = $region3
  $region8: #{tpu_custom_call.1} parent=0 // loop_exit
    _

</llo_original>
